<compile_context>
chip_gen: v6e
topology: v6e:2x2x1
jax: 0.10.0
libtpu: 0.0.40
codegen_flags: <defaults>
</compile_context>

<pallas_src>
import jax
import jax.numpy as jnp
from jax.experimental import pallas as pl
from jax.experimental.pallas import tpu as pltpu


# ---------------------------------------------------------------- helpers ----
def _round_up(v, m):
    return (v + m - 1) // m * m


_SQRT_HALF = 0.7071067811865476
_GELU_C = 0.7978845608028654   # sqrt(2/pi)


def _gelu_tanh(x):
    # tanh-approx GELU: routes through the EUP (free slot) instead of the VALU erf
    # polynomial. |error| vs exact GELU is ~3e-4, well inside the check in __main__.
    return 0.5 * x * (1.0 + jnp.tanh(_GELU_C * (x + 0.044715 * (x * x * x))))


def _gelu_exact(x):
    # nn.GELU() default = exact (erf-based) GELU; used only by the pure-JAX reference.
    return 0.5 * x * (1.0 + jax.lax.erf(x * _SQRT_HALF))


# ----------------------------------------------------------------- kernel ----
def _make_kernel(S, TB, d_feat, num_vec, latent_dim):
    """Fused forward for one batch chunk of TB rows (TB % 8 == 0)."""
    Lm1 = latent_dim - 1

    def kernel(x_ref, ew1a_ref, embp_ref, eb1_ref, ew2_ref, eb2_ref,
               dw1_ref, db1_ref, dw2_ref, db2_ref, dec_ref, lat_ref):
        # x_ref: (S, TB, d_feat+1), S-major.  TB % 8 == 0, so merging the leading
        # dims below is a layout-free reshape (no sublane/lane movement).
        rows = x_ref[...].reshape(S * TB, d_feat + 1)
        feats = rows[:, :d_feat]                                 # (S*TB, d_feat)
        # Embedding index travels as float (exact for small num_vec), cast like .int().
        idx = rows[:, d_feat:d_feat + 1].astype(jnp.int32)       # (S*TB, 1)

        # Embedding folded into encoder layer 1:
        #   h = feats @ W1[:d_feat] + one_hot(idx) @ (emb_table @ W1[d_feat:]) + b1
        # The one-hot matmul runs on the otherwise-idle MXU; no gather, no lane concat.
        # NOTE: out-of-range / negative indices give an all-zero contribution,
        # where nn.Embedding would raise instead.
        iota = jax.lax.broadcasted_iota(jnp.int32, (S * TB, num_vec), 1)
        onehot = (iota == idx).astype(jnp.float32)               # (S*TB, num_vec)
        h = (jnp.dot(feats, ew1a_ref[...], preferred_element_type=jnp.float32)
             + jnp.dot(onehot, embp_ref[...], preferred_element_type=jnp.float32)
             + eb1_ref[...])
        h = _gelu_tanh(h)
        enc = jnp.dot(h, ew2_ref[...], preferred_element_type=jnp.float32) + eb2_ref[...]

        # Drop last latent channel + GELU (elementwise, commutes with the flatten).
        g = _gelu_tanh(enc[:, :Lm1])                             # (S*TB, L-1)
        g3 = g.reshape(S, TB, Lm1)                               # free leading-dim split

        # Flatten z[b, s*(L-1)+c] = g3[s, b, c] without any lane-direction concat:
        #  * decoder input: per-position MXU accumulation against dw1 reshaped to
        #    (S, L-1, H) in the wrapper;
        #  * latent output: per-position lane stores straight into lat_ref
        #    (every one of the 56 columns is written -> no stale data).
        hd = db1_ref[...] + jnp.dot(g3[0], dw1_ref[0],
                                    preferred_element_type=jnp.float32)
        lat_ref[:, 0:Lm1] = g3[0]
        for s in range(1, S):
            hd = hd + jnp.dot(g3[s], dw1_ref[s],
                              preferred_element_type=jnp.float32)
            lat_ref[:, s * Lm1:(s + 1) * Lm1] = g3[s]
        hd = _gelu_tanh(hd)

        # dw2/db2 are zero-padded to a 128-lane multiple in the wrapper, so this is a
        # single unmasked lane-dense store; the pad columns are exact zeros.
        dec_ref[...] = (jnp.dot(hd, dw2_ref[...], preferred_element_type=jnp.float32)
                        + db2_ref[...])

    return kernel


# ---------------------------------------------------------------- wrapper ----
def local_autoencoder_forward(x, params, *, max_batch_block=512):
    """x: (B, S, input_dim + 1); last channel is the embedding index (as float).
    Returns (decoder_output (B, input_dim*senquenz_length),
             latent_flattened (B, latent_dim*senquenz_length))."""
    B, S, d_in1 = x.shape
    d_feat = d_in1 - 1

    emb_tbl = params["emb"]
    num_vec, emb_dim = emb_tbl.shape
    ew1, eb1 = params["enc_w1"], params["enc_b1"]
    ew2, eb2 = params["enc_w2"], params["enc_b2"]
    dw1, db1 = params["dec_w1"], params["dec_b1"]
    dw2, db2 = params["dec_w2"], params["dec_b2"]

    latent_dim = ew2.shape[1]
    flat_latent = dw1.shape[0]
    dec_hidden = dw1.shape[1]
    out_dim = dw2.shape[1]

    assert ew1.shape[0] == d_feat + emb_dim, "encoder input width mismatch"
    # The module's flatten only works when S*(latent_dim-1) == latent_dim*senquenz_length.
    assert S * (latent_dim - 1) == flat_latent, (S, latent_dim, flat_latent)
    # The index is carried as float in x; exact only while num_vec fits a f32 mantissa.
    assert num_vec < (1 << 24), num_vec

    # Fold the embedding lookup into encoder layer 1 (tiny, done once per call).
    hp = jax.lax.Precision.HIGHEST
    ew1_a = ew1[:d_feat, :]
    emb_proj = jnp.dot(emb_tbl, ew1[d_feat:, :], precision=hp)     # (num_vec, enc_h1)

    # Decoder layer-1 weight reshaped so the kernel can accumulate per position.
    dw1_s = dw1.reshape(S, latent_dim - 1, dec_hidden)
    # Decoder layer-2 padded to a lane-dense width (pad columns produce exact zeros).
    dec_pad_w = _round_up(out_dim, 128)
    dw2_p = jnp.pad(dw2, ((0, 0), (0, dec_pad_w - out_dim)))
    db2_p = jnp.pad(db2, ((0, 0), (0, dec_pad_w - out_dim)))

    # Batch tiling: TB multiple of 8 (sublane aligned), capped at max_batch_block,
    # and small enough that the grid keeps >=4 steps when B allows it so the
    # "parallel" axis can be sharded across v7x's two TensorCores.
    TB = min(_round_up(max(1, (B + 3) // 4), 8), max_batch_block)
    Bp = _round_up(B, TB)
    grid = (Bp // TB,)

    # Layout plumbing: S-major so each position s is a clean leading-dim slice.
    # TODO(synk): on v5e, accept S-major input upstream to save this extra HBM pass
    # over x (only matters when x itself is bandwidth-significant).
    xt = jnp.transpose(x, (1, 0, 2)).astype(jnp.float32)            # (S, B, d_in1)
    if Bp != B:
        xt = jnp.pad(xt, ((0, 0), (0, Bp - B), (0, 0)))

    vmem = pl.BlockSpec(memory_space=pltpu.MemorySpace.VMEM)

    # Advisory cost hint so XLA schedules the microsecond-scale call tightly.
    enc_h1 = ew1.shape[1]
    flops = 2 * Bp * (S * (d_feat * enc_h1 + num_vec * enc_h1 + enc_h1 * latent_dim)
                      + flat_latent * dec_hidden + dec_hidden * dec_pad_w)
    transcendentals = Bp * (S * (enc_h1 + latent_dim - 1) + dec_hidden)
    bytes_accessed = 4 * (xt.size + ew1_a.size + emb_proj.size + eb1.size
                          + ew2.size + eb2.size + dw1.size + db1.size
                          + dw2_p.size + db2_p.size
                          + Bp * (dec_pad_w + flat_latent))

    kernel = _make_kernel(S, TB, d_feat, num_vec, latent_dim)

    dec_padded, lat_out = pl.pallas_call(
        kernel,
        grid=grid,
        in_specs=[pl.BlockSpec((S, TB, d_in1), lambda j: (0, j, 0))] + [vmem] * 9,
        out_specs=(pl.BlockSpec((TB, dec_pad_w), lambda j: (j, 0)),
                   pl.BlockSpec((TB, flat_latent), lambda j: (j, 0))),
        out_shape=(jax.ShapeDtypeStruct((Bp, dec_pad_w), jnp.float32),
                   jax.ShapeDtypeStruct((Bp, flat_latent), jnp.float32)),
        compiler_params=pltpu.CompilerParams(dimension_semantics=("parallel",)),
        cost_estimate=pl.CostEstimate(flops=flops,
                                      transcendentals=transcendentals,
                                      bytes_accessed=bytes_accessed),
    )(xt, ew1_a, emb_proj, eb1, ew2, eb2, dw1_s, db1, dw2_p, db2_p)

    # Slice off batch padding and the decoder lane padding (layout plumbing only).
    return dec_padded[:B, :out_dim], lat_out[:B]


# --------------------------------------------------------------- reference ---
def reference_forward(x, params):
    """Pure-JAX reference mirroring LocalAutoencoder.forward (exact erf GELU)."""
    hp = jax.lax.Precision.HIGHEST
    feats = x[..., :-1]
    idx = x[..., -1].astype(jnp.int32)
    emb = params["emb"][idx]
    enc_in = jnp.concatenate([feats, emb], axis=-1)
    h = jnp.dot(enc_in, params["enc_w1"], precision=hp) + params["enc_b1"]
    h = _gelu_exact(h)
    enc = jnp.dot(h, params["enc_w2"], precision=hp) + params["enc_b2"]
    latent = enc[:, :, :-1]
    z = _gelu_exact(latent.reshape(latent.shape[0], -1))
    hd = jnp.dot(z, params["dec_w1"], precision=hp) + params["dec_b1"]
    hd = _gelu_exact(hd)
    dec = jnp.dot(hd, params["dec_w2"], precision=hp) + params["dec_b2"]
    return dec, z


# ---------------------------------------------------------------- params -----
def make_params(key, *, input_dim, latent_dim, num_layers_enc, num_layers_dec,
                emb_dim, num_vec, senquenz_length):
    # Reproduce the dimension arithmetic of LocalAutoencoder.__init__.
    red_in = (input_dim - latent_dim) / num_layers_enc
    red_emb = emb_dim / num_layers_enc
    dims_enc = [input_dim + emb_dim]
    for i in range(num_layers_enc):
        dims_enc.append(round(input_dim + emb_dim - (red_in + red_emb) * (i + 1)))

    flat_latent = latent_dim * senquenz_length
    flat_out = input_dim * senquenz_length
    inc_lat = (flat_out - input_dim) / num_layers_dec
    dims_dec = [flat_latent]
    for i in range(num_layers_dec - 1):
        dims_dec.append(round(input_dim + emb_dim + (inc_lat - red_emb) * (i + 1)))
    dims_dec.append(flat_out)

    assert len(dims_enc) == 3 and len(dims_dec) == 3, (dims_enc, dims_dec)

    ks = jax.random.split(key, 9)
    p = {
        "emb": jax.random.normal(ks[0], (num_vec, emb_dim), jnp.float32),
        # weights stored (in, out); biases stored (1, out)
        "enc_w1": 0.1 * jax.random.normal(ks[1], (dims_enc[0], dims_enc[1]), jnp.float32),
        "enc_b1": 0.1 * jax.random.normal(ks[2], (1, dims_enc[1]), jnp.float32),
        "enc_w2": 0.1 * jax.random.normal(ks[3], (dims_enc[1], dims_enc[2]), jnp.float32),
        "enc_b2": 0.1 * jax.random.normal(ks[4], (1, dims_enc[2]), jnp.float32),
        "dec_w1": 0.1 * jax.random.normal(ks[5], (dims_dec[0], dims_dec[1]), jnp.float32),
        "dec_b1": 0.1 * jax.random.normal(ks[6], (1, dims_dec[1]), jnp.float32),
        "dec_w2": 0.1 * jax.random.normal(ks[7], (dims_dec[1], dims_dec[2]), jnp.float32),
        "dec_b2": 0.1 * jax.random.normal(ks[8], (1, dims_dec[2]), jnp.float32),
    }
    return p, dims_enc, dims_dec


# ---------------------------------------------------------------- main -------
if __name__ == "__main__":
    INPUT_DIM = 16
    LATENT_DIM = 8
    NUM_LAYERS_ENC = 2
    NUM_LAYERS_DEC = 2
    EMB_DIM = 8
    NUM_VEC = 32
    SEQ_LEN_CFG = 7     # "senquenz_length" in __init__
    B = 2
    S = 8               # runtime seq: S*(LATENT_DIM-1) == LATENT_DIM*SEQ_LEN_CFG == 56

    key = jax.random.PRNGKey(0)
    kp, kf, ki = jax.random.split(key, 3)

    params, dims_enc, dims_dec = make_params(
        kp, input_dim=INPUT_DIM, latent_dim=LATENT_DIM,
        num_layers_enc=NUM_LAYERS_ENC, num_layers_dec=NUM_LAYERS_DEC,
        emb_dim=EMB_DIM, num_vec=NUM_VEC, senquenz_length=SEQ_LEN_CFG)

    # x: (B, S, input_dim + 1); last channel holds the embedding index (as float)
    feats = jax.random.normal(kf, (B, S, INPUT_DIM), jnp.float32)
    idx = jax.random.randint(ki, (B, S, 1), 0, NUM_VEC).astype(jnp.float32)
    x = jnp.concatenate([feats, idx], axis=-1)

    fwd = jax.jit(local_autoencoder_forward)
    dec_out, latent_flat = fwd(x, params)
    jax.block_until_ready((dec_out, latent_flat))

    assert dec_out.shape == (B, INPUT_DIM * SEQ_LEN_CFG), dec_out.shape
    assert latent_flat.shape == (B, LATENT_DIM * SEQ_LEN_CFG), latent_flat.shape

    # Loose-tolerance check vs the exact-GELU / HIGHEST-precision reference
    # (kernel uses default MXU precision + tanh-approx GELU).
    dec_expect, lat_expect = reference_forward(x, params)
    assert float(jnp.max(jnp.abs(latent_flat - lat_expect))) < 2e-2
    assert float(jnp.max(jnp.abs(dec_out - dec_expect))) < 2e-2

    print("KERNEL_OK")
</pallas_src>

<mosaic_0001>
module attributes {stable_mosaic.version = 11 : i64} {
  func.func @kernel(%arg0: i32, %arg1: memref<8x8x17xf32, #tpu.memory_space<vmem>>, %arg2: memref<16x16xf32, #tpu.memory_space<vmem>>, %arg3: memref<32x16xf32, #tpu.memory_space<vmem>>, %arg4: memref<1x16xf32, #tpu.memory_space<vmem>>, %arg5: memref<16x8xf32, #tpu.memory_space<vmem>>, %arg6: memref<1x8xf32, #tpu.memory_space<vmem>>, %arg7: memref<8x7x68xf32, #tpu.memory_space<vmem>>, %arg8: memref<1x68xf32, #tpu.memory_space<vmem>>, %arg9: memref<68x128xf32, #tpu.memory_space<vmem>>, %arg10: memref<1x128xf32, #tpu.memory_space<vmem>>, %arg11: memref<8x128xf32, #tpu.memory_space<vmem>>, %arg12: memref<8x56xf32, #tpu.memory_space<vmem>>) attributes {dimension_semantics = [#tpu.dimension_semantics<parallel>], iteration_bounds = array<i64: 1>, scalar_prefetch = 0 : i64, scratch_operands = 0 : i64, tpu.core_type = #tpu.core_type<tc>, window_params = [{transform_indices = @transform_0, window_bounds = array<i64: 8, 8, 17>}, {pipeline_mode = #tpu.pipeline_mode<synchronous>, transform_indices = @transform_1, window_bounds = array<i64: 16, 16>}, {pipeline_mode = #tpu.pipeline_mode<synchronous>, transform_indices = @transform_2, window_bounds = array<i64: 32, 16>}, {pipeline_mode = #tpu.pipeline_mode<synchronous>, transform_indices = @transform_3, window_bounds = array<i64: 1, 16>}, {pipeline_mode = #tpu.pipeline_mode<synchronous>, transform_indices = @transform_4, window_bounds = array<i64: 16, 8>}, {pipeline_mode = #tpu.pipeline_mode<synchronous>, transform_indices = @transform_5, window_bounds = array<i64: 1, 8>}, {pipeline_mode = #tpu.pipeline_mode<synchronous>, transform_indices = @transform_6, window_bounds = array<i64: 8, 7, 68>}, {pipeline_mode = #tpu.pipeline_mode<synchronous>, transform_indices = @transform_7, window_bounds = array<i64: 1, 68>}, {pipeline_mode = #tpu.pipeline_mode<synchronous>, transform_indices = @transform_8, window_bounds = array<i64: 68, 128>}, {pipeline_mode = #tpu.pipeline_mode<synchronous>, transform_indices = @transform_9, window_bounds = array<i64: 1, 128>}, {transform_indices = @transform_10, window_bounds = array<i64: 8, 128>}, {transform_indices = @transform_11, window_bounds = array<i64: 8, 56>}]} {
    %c0 = arith.constant 0 : index
    %c0_0 = arith.constant 0 : index
    %c0_1 = arith.constant 0 : index
    %0 = vector.load %arg1[%c0, %c0_0, %c0_1] : memref<8x8x17xf32, #tpu.memory_space<vmem>>, vector<8x8x17xf32>
    %1 = vector.shape_cast %0 : vector<8x8x17xf32> to vector<64x17xf32>
    %2 = vector.extract_strided_slice %1 {offsets = [0, 0], sizes = [64, 16], strides = [1, 1]} : vector<64x17xf32> to vector<64x16xf32>
    %3 = vector.extract_strided_slice %1 {offsets = [0, 16], sizes = [64, 1], strides = [1, 1]} : vector<64x17xf32> to vector<64x1xf32>
    %4 = arith.fptosi %3 : vector<64x1xf32> to vector<64x1xi32>
    %5 = tpu.iota {dimensions = array<i32: 1>} : vector<64x32xi32>
    %6 = vector.broadcast %4 : vector<64x1xi32> to vector<64x32xi32>
    %7 = arith.cmpi eq, %5, %6 : vector<64x32xi32>
    %8 = arith.extui %7 : vector<64x32xi1> to vector<64x32xi32>
    %9 = arith.sitofp %8 : vector<64x32xi32> to vector<64x32xf32>
    %c0_2 = arith.constant 0 : index
    %c0_3 = arith.constant 0 : index
    %10 = vector.load %arg2[%c0_2, %c0_3] : memref<16x16xf32, #tpu.memory_space<vmem>>, vector<16x16xf32>
    %cst = arith.constant dense<0.000000e+00> : vector<64x16xf32>
    %11 = tpu.matmul %2, %10, %cst {dimension_numbers = #tpu.dot_dimension_numbers<[1], [0], [0], [1], [0, 0, 1, 1], [], []>} : vector<64x16xf32>, vector<16x16xf32>, vector<64x16xf32> -> vector<64x16xf32>
    %c0_4 = arith.constant 0 : index
    %c0_5 = arith.constant 0 : index
    %12 = vector.load %arg3[%c0_4, %c0_5] : memref<32x16xf32, #tpu.memory_space<vmem>>, vector<32x16xf32>
    %cst_6 = arith.constant dense<0.000000e+00> : vector<64x16xf32>
    %13 = tpu.matmul %9, %12, %cst_6 {dimension_numbers = #tpu.dot_dimension_numbers<[1], [0], [0], [1], [0, 0, 1, 1], [], []>} : vector<64x32xf32>, vector<32x16xf32>, vector<64x16xf32> -> vector<64x16xf32>
    %14 = arith.addf %11, %13 : vector<64x16xf32>
    %c0_7 = arith.constant 0 : index
    %c0_8 = arith.constant 0 : index
    %15 = vector.load %arg4[%c0_7, %c0_8] : memref<1x16xf32, #tpu.memory_space<vmem>>, vector<1x16xf32>
    %16 = vector.broadcast %15 : vector<1x16xf32> to vector<64x16xf32>
    %17 = arith.addf %14, %16 : vector<64x16xf32>
    %cst_9 = arith.constant 5.000000e-01 : f32
    %18 = vector.broadcast %cst_9 : f32 to vector<64x16xf32>
    %19 = arith.mulf %18, %17 : vector<64x16xf32>
    %20 = arith.mulf %17, %17 : vector<64x16xf32>
    %21 = arith.mulf %20, %17 : vector<64x16xf32>
    %cst_10 = arith.constant 4.471500e-02 : f32
    %22 = vector.broadcast %cst_10 : f32 to vector<64x16xf32>
    %23 = arith.mulf %22, %21 : vector<64x16xf32>
    %24 = arith.addf %17, %23 : vector<64x16xf32>
    %cst_11 = arith.constant 0.797884583 : f32
    %25 = vector.broadcast %cst_11 : f32 to vector<64x16xf32>
    %26 = arith.mulf %25, %24 : vector<64x16xf32>
    %27 = math.tanh %26 : vector<64x16xf32>
    %cst_12 = arith.constant 1.000000e+00 : f32
    %28 = vector.broadcast %cst_12 : f32 to vector<64x16xf32>
    %29 = arith.addf %28, %27 : vector<64x16xf32>
    %30 = arith.mulf %19, %29 : vector<64x16xf32>
    %c0_13 = arith.constant 0 : index
    %c0_14 = arith.constant 0 : index
    %31 = vector.load %arg5[%c0_13, %c0_14] : memref<16x8xf32, #tpu.memory_space<vmem>>, vector<16x8xf32>
    %cst_15 = arith.constant dense<0.000000e+00> : vector<64x8xf32>
    %32 = tpu.matmul %30, %31, %cst_15 {dimension_numbers = #tpu.dot_dimension_numbers<[1], [0], [0], [1], [0, 0, 1, 1], [], []>} : vector<64x16xf32>, vector<16x8xf32>, vector<64x8xf32> -> vector<64x8xf32>
    %c0_16 = arith.constant 0 : index
    %c0_17 = arith.constant 0 : index
    %33 = vector.load %arg6[%c0_16, %c0_17] : memref<1x8xf32, #tpu.memory_space<vmem>>, vector<1x8xf32>
    %34 = vector.broadcast %33 : vector<1x8xf32> to vector<64x8xf32>
    %35 = arith.addf %32, %34 : vector<64x8xf32>
    %36 = vector.extract_strided_slice %35 {offsets = [0, 0], sizes = [64, 7], strides = [1, 1]} : vector<64x8xf32> to vector<64x7xf32>
    %cst_18 = arith.constant 5.000000e-01 : f32
    %37 = vector.broadcast %cst_18 : f32 to vector<64x7xf32>
    %38 = arith.mulf %37, %36 : vector<64x7xf32>
    %39 = arith.mulf %36, %36 : vector<64x7xf32>
    %40 = arith.mulf %39, %36 : vector<64x7xf32>
    %cst_19 = arith.constant 4.471500e-02 : f32
    %41 = vector.broadcast %cst_19 : f32 to vector<64x7xf32>
    %42 = arith.mulf %41, %40 : vector<64x7xf32>
    %43 = arith.addf %36, %42 : vector<64x7xf32>
    %cst_20 = arith.constant 0.797884583 : f32
    %44 = vector.broadcast %cst_20 : f32 to vector<64x7xf32>
    %45 = arith.mulf %44, %43 : vector<64x7xf32>
    %46 = math.tanh %45 : vector<64x7xf32>
    %cst_21 = arith.constant 1.000000e+00 : f32
    %47 = vector.broadcast %cst_21 : f32 to vector<64x7xf32>
    %48 = arith.addf %47, %46 : vector<64x7xf32>
    %49 = arith.mulf %38, %48 : vector<64x7xf32>
    %50 = vector.shape_cast %49 : vector<64x7xf32> to vector<8x8x7xf32>
    %c0_22 = arith.constant 0 : index
    %c0_23 = arith.constant 0 : index
    %51 = vector.load %arg8[%c0_22, %c0_23] : memref<1x68xf32, #tpu.memory_space<vmem>>, vector<1x68xf32>
    %52 = vector.extract_strided_slice %50 {offsets = [0, 0, 0], sizes = [1, 8, 7], strides = [1, 1, 1]} : vector<8x8x7xf32> to vector<1x8x7xf32>
    %53 = vector.shape_cast %52 : vector<1x8x7xf32> to vector<8x7xf32>
    %c0_24 = arith.constant 0 : index
    %c0_25 = arith.constant 0 : index
    %c0_26 = arith.constant 0 : index
    %54 = vector.load %arg7[%c0_24, %c0_25, %c0_26] : memref<8x7x68xf32, #tpu.memory_space<vmem>>, vector<1x7x68xf32>
    %55 = vector.shape_cast %54 : vector<1x7x68xf32> to vector<7x68xf32>
    %cst_27 = arith.constant dense<0.000000e+00> : vector<8x68xf32>
    %56 = tpu.matmul %53, %55, %cst_27 {dimension_numbers = #tpu.dot_dimension_numbers<[1], [0], [0], [1], [0, 0, 1, 1], [], []>} : vector<8x7xf32>, vector<7x68xf32>, vector<8x68xf32> -> vector<8x68xf32>
    %57 = vector.broadcast %51 : vector<1x68xf32> to vector<8x68xf32>
    %58 = arith.addf %57, %56 : vector<8x68xf32>
    %59 = vector.extract_strided_slice %50 {offsets = [0, 0, 0], sizes = [1, 8, 7], strides = [1, 1, 1]} : vector<8x8x7xf32> to vector<1x8x7xf32>
    %60 = vector.shape_cast %59 : vector<1x8x7xf32> to vector<8x7xf32>
    %c0_28 = arith.constant 0 : index
    %c0_29 = arith.constant 0 : index
    %61 = vector.load %arg12[%c0_28, %c0_29] : memref<8x56xf32, #tpu.memory_space<vmem>>, vector<8x7xf32>
    tpu.vector_store %arg12[%c0_28, %c0_29], %60 {strides = array<i32>} : memref<8x56xf32, #tpu.memory_space<vmem>>, vector<8x7xf32>,
    %62 = vector.extract_strided_slice %50 {offsets = [1, 0, 0], sizes = [1, 8, 7], strides = [1, 1, 1]} : vector<8x8x7xf32> to vector<1x8x7xf32>
    %63 = vector.shape_cast %62 : vector<1x8x7xf32> to vector<8x7xf32>
    %c1 = arith.constant 1 : index
    %c0_30 = arith.constant 0 : index
    %c0_31 = arith.constant 0 : index
    %64 = vector.load %arg7[%c1, %c0_30, %c0_31] : memref<8x7x68xf32, #tpu.memory_space<vmem>>, vector<1x7x68xf32>
    %65 = vector.shape_cast %64 : vector<1x7x68xf32> to vector<7x68xf32>
    %cst_32 = arith.constant dense<0.000000e+00> : vector<8x68xf32>
    %66 = tpu.matmul %63, %65, %cst_32 {dimension_numbers = #tpu.dot_dimension_numbers<[1], [0], [0], [1], [0, 0, 1, 1], [], []>} : vector<8x7xf32>, vector<7x68xf32>, vector<8x68xf32> -> vector<8x68xf32>
    %67 = arith.addf %58, %66 : vector<8x68xf32>
    %68 = vector.extract_strided_slice %50 {offsets = [1, 0, 0], sizes = [1, 8, 7], strides = [1, 1, 1]} : vector<8x8x7xf32> to vector<1x8x7xf32>
    %69 = vector.shape_cast %68 : vector<1x8x7xf32> to vector<8x7xf32>
    %c0_33 = arith.constant 0 : index
    %c7 = arith.constant 7 : index
    %70 = vector.load %arg12[%c0_33, %c7] : memref<8x56xf32, #tpu.memory_space<vmem>>, vector<8x7xf32>
    tpu.vector_store %arg12[%c0_33, %c7], %69 {strides = array<i32>} : memref<8x56xf32, #tpu.memory_space<vmem>>, vector<8x7xf32>,
    %71 = vector.extract_strided_slice %50 {offsets = [2, 0, 0], sizes = [1, 8, 7], strides = [1, 1, 1]} : vector<8x8x7xf32> to vector<1x8x7xf32>
    %72 = vector.shape_cast %71 : vector<1x8x7xf32> to vector<8x7xf32>
    %c2 = arith.constant 2 : index
    %c0_34 = arith.constant 0 : index
    %c0_35 = arith.constant 0 : index
    %73 = vector.load %arg7[%c2, %c0_34, %c0_35] : memref<8x7x68xf32, #tpu.memory_space<vmem>>, vector<1x7x68xf32>
    %74 = vector.shape_cast %73 : vector<1x7x68xf32> to vector<7x68xf32>
    %cst_36 = arith.constant dense<0.000000e+00> : vector<8x68xf32>
    %75 = tpu.matmul %72, %74, %cst_36 {dimension_numbers = #tpu.dot_dimension_numbers<[1], [0], [0], [1], [0, 0, 1, 1], [], []>} : vector<8x7xf32>, vector<7x68xf32>, vector<8x68xf32> -> vector<8x68xf32>
    %76 = arith.addf %67, %75 : vector<8x68xf32>
    %77 = vector.extract_strided_slice %50 {offsets = [2, 0, 0], sizes = [1, 8, 7], strides = [1, 1, 1]} : vector<8x8x7xf32> to vector<1x8x7xf32>
    %78 = vector.shape_cast %77 : vector<1x8x7xf32> to vector<8x7xf32>
    %c0_37 = arith.constant 0 : index
    %c14 = arith.constant 14 : index
    %79 = vector.load %arg12[%c0_37, %c14] : memref<8x56xf32, #tpu.memory_space<vmem>>, vector<8x7xf32>
    tpu.vector_store %arg12[%c0_37, %c14], %78 {strides = array<i32>} : memref<8x56xf32, #tpu.memory_space<vmem>>, vector<8x7xf32>,
    %80 = vector.extract_strided_slice %50 {offsets = [3, 0, 0], sizes = [1, 8, 7], strides = [1, 1, 1]} : vector<8x8x7xf32> to vector<1x8x7xf32>
    %81 = vector.shape_cast %80 : vector<1x8x7xf32> to vector<8x7xf32>
    %c3 = arith.constant 3 : index
    %c0_38 = arith.constant 0 : index
    %c0_39 = arith.constant 0 : index
    %82 = vector.load %arg7[%c3, %c0_38, %c0_39] : memref<8x7x68xf32, #tpu.memory_space<vmem>>, vector<1x7x68xf32>
    %83 = vector.shape_cast %82 : vector<1x7x68xf32> to vector<7x68xf32>
    %cst_40 = arith.constant dense<0.000000e+00> : vector<8x68xf32>
    %84 = tpu.matmul %81, %83, %cst_40 {dimension_numbers = #tpu.dot_dimension_numbers<[1], [0], [0], [1], [0, 0, 1, 1], [], []>} : vector<8x7xf32>, vector<7x68xf32>, vector<8x68xf32> -> vector<8x68xf32>
    %85 = arith.addf %76, %84 : vector<8x68xf32>
    %86 = vector.extract_strided_slice %50 {offsets = [3, 0, 0], sizes = [1, 8, 7], strides = [1, 1, 1]} : vector<8x8x7xf32> to vector<1x8x7xf32>
    %87 = vector.shape_cast %86 : vector<1x8x7xf32> to vector<8x7xf32>
    %c0_41 = arith.constant 0 : index
    %c21 = arith.constant 21 : index
    %88 = vector.load %arg12[%c0_41, %c21] : memref<8x56xf32, #tpu.memory_space<vmem>>, vector<8x7xf32>
    tpu.vector_store %arg12[%c0_41, %c21], %87 {strides = array<i32>} : memref<8x56xf32, #tpu.memory_space<vmem>>, vector<8x7xf32>,
    %89 = vector.extract_strided_slice %50 {offsets = [4, 0, 0], sizes = [1, 8, 7], strides = [1, 1, 1]} : vector<8x8x7xf32> to vector<1x8x7xf32>
    %90 = vector.shape_cast %89 : vector<1x8x7xf32> to vector<8x7xf32>
    %c4 = arith.constant 4 : index
    %c0_42 = arith.constant 0 : index
    %c0_43 = arith.constant 0 : index
    %91 = vector.load %arg7[%c4, %c0_42, %c0_43] : memref<8x7x68xf32, #tpu.memory_space<vmem>>, vector<1x7x68xf32>
    %92 = vector.shape_cast %91 : vector<1x7x68xf32> to vector<7x68xf32>
    %cst_44 = arith.constant dense<0.000000e+00> : vector<8x68xf32>
    %93 = tpu.matmul %90, %92, %cst_44 {dimension_numbers = #tpu.dot_dimension_numbers<[1], [0], [0], [1], [0, 0, 1, 1], [], []>} : vector<8x7xf32>, vector<7x68xf32>, vector<8x68xf32> -> vector<8x68xf32>
    %94 = arith.addf %85, %93 : vector<8x68xf32>
    %95 = vector.extract_strided_slice %50 {offsets = [4, 0, 0], sizes = [1, 8, 7], strides = [1, 1, 1]} : vector<8x8x7xf32> to vector<1x8x7xf32>
    %96 = vector.shape_cast %95 : vector<1x8x7xf32> to vector<8x7xf32>
    %c0_45 = arith.constant 0 : index
    %c28 = arith.constant 28 : index
    %97 = vector.load %arg12[%c0_45, %c28] : memref<8x56xf32, #tpu.memory_space<vmem>>, vector<8x7xf32>
    tpu.vector_store %arg12[%c0_45, %c28], %96 {strides = array<i32>} : memref<8x56xf32, #tpu.memory_space<vmem>>, vector<8x7xf32>,
    %98 = vector.extract_strided_slice %50 {offsets = [5, 0, 0], sizes = [1, 8, 7], strides = [1, 1, 1]} : vector<8x8x7xf32> to vector<1x8x7xf32>
    %99 = vector.shape_cast %98 : vector<1x8x7xf32> to vector<8x7xf32>
    %c5 = arith.constant 5 : index
    %c0_46 = arith.constant 0 : index
    %c0_47 = arith.constant 0 : index
    %100 = vector.load %arg7[%c5, %c0_46, %c0_47] : memref<8x7x68xf32, #tpu.memory_space<vmem>>, vector<1x7x68xf32>
    %101 = vector.shape_cast %100 : vector<1x7x68xf32> to vector<7x68xf32>
    %cst_48 = arith.constant dense<0.000000e+00> : vector<8x68xf32>
    %102 = tpu.matmul %99, %101, %cst_48 {dimension_numbers = #tpu.dot_dimension_numbers<[1], [0], [0], [1], [0, 0, 1, 1], [], []>} : vector<8x7xf32>, vector<7x68xf32>, vector<8x68xf32> -> vector<8x68xf32>
    %103 = arith.addf %94, %102 : vector<8x68xf32>
    %104 = vector.extract_strided_slice %50 {offsets = [5, 0, 0], sizes = [1, 8, 7], strides = [1, 1, 1]} : vector<8x8x7xf32> to vector<1x8x7xf32>
    %105 = vector.shape_cast %104 : vector<1x8x7xf32> to vector<8x7xf32>
    %c0_49 = arith.constant 0 : index
    %c35 = arith.constant 35 : index
    %106 = vector.load %arg12[%c0_49, %c35] : memref<8x56xf32, #tpu.memory_space<vmem>>, vector<8x7xf32>
    tpu.vector_store %arg12[%c0_49, %c35], %105 {strides = array<i32>} : memref<8x56xf32, #tpu.memory_space<vmem>>, vector<8x7xf32>,
    %107 = vector.extract_strided_slice %50 {offsets = [6, 0, 0], sizes = [1, 8, 7], strides = [1, 1, 1]} : vector<8x8x7xf32> to vector<1x8x7xf32>
    %108 = vector.shape_cast %107 : vector<1x8x7xf32> to vector<8x7xf32>
    %c6 = arith.constant 6 : index
    %c0_50 = arith.constant 0 : index
    %c0_51 = arith.constant 0 : index
    %109 = vector.load %arg7[%c6, %c0_50, %c0_51] : memref<8x7x68xf32, #tpu.memory_space<vmem>>, vector<1x7x68xf32>
    %110 = vector.shape_cast %109 : vector<1x7x68xf32> to vector<7x68xf32>
    %cst_52 = arith.constant dense<0.000000e+00> : vector<8x68xf32>
    %111 = tpu.matmul %108, %110, %cst_52 {dimension_numbers = #tpu.dot_dimension_numbers<[1], [0], [0], [1], [0, 0, 1, 1], [], []>} : vector<8x7xf32>, vector<7x68xf32>, vector<8x68xf32> -> vector<8x68xf32>
    %112 = arith.addf %103, %111 : vector<8x68xf32>
    %113 = vector.extract_strided_slice %50 {offsets = [6, 0, 0], sizes = [1, 8, 7], strides = [1, 1, 1]} : vector<8x8x7xf32> to vector<1x8x7xf32>
    %114 = vector.shape_cast %113 : vector<1x8x7xf32> to vector<8x7xf32>
    %c0_53 = arith.constant 0 : index
    %c42 = arith.constant 42 : index
    %115 = vector.load %arg12[%c0_53, %c42] : memref<8x56xf32, #tpu.memory_space<vmem>>, vector<8x7xf32>
    tpu.vector_store %arg12[%c0_53, %c42], %114 {strides = array<i32>} : memref<8x56xf32, #tpu.memory_space<vmem>>, vector<8x7xf32>,
    %116 = vector.extract_strided_slice %50 {offsets = [7, 0, 0], sizes = [1, 8, 7], strides = [1, 1, 1]} : vector<8x8x7xf32> to vector<1x8x7xf32>
    %117 = vector.shape_cast %116 : vector<1x8x7xf32> to vector<8x7xf32>
    %c7_54 = arith.constant 7 : index
    %c0_55 = arith.constant 0 : index
    %c0_56 = arith.constant 0 : index
    %118 = vector.load %arg7[%c7_54, %c0_55, %c0_56] : memref<8x7x68xf32, #tpu.memory_space<vmem>>, vector<1x7x68xf32>
    %119 = vector.shape_cast %118 : vector<1x7x68xf32> to vector<7x68xf32>
    %cst_57 = arith.constant dense<0.000000e+00> : vector<8x68xf32>
    %120 = tpu.matmul %117, %119, %cst_57 {dimension_numbers = #tpu.dot_dimension_numbers<[1], [0], [0], [1], [0, 0, 1, 1], [], []>} : vector<8x7xf32>, vector<7x68xf32>, vector<8x68xf32> -> vector<8x68xf32>
    %121 = arith.addf %112, %120 : vector<8x68xf32>
    %122 = vector.extract_strided_slice %50 {offsets = [7, 0, 0], sizes = [1, 8, 7], strides = [1, 1, 1]} : vector<8x8x7xf32> to vector<1x8x7xf32>
    %123 = vector.shape_cast %122 : vector<1x8x7xf32> to vector<8x7xf32>
    %c0_58 = arith.constant 0 : index
    %c49 = arith.constant 49 : index
    %124 = vector.load %arg12[%c0_58, %c49] : memref<8x56xf32, #tpu.memory_space<vmem>>, vector<8x7xf32>
    tpu.vector_store %arg12[%c0_58, %c49], %123 {strides = array<i32>} : memref<8x56xf32, #tpu.memory_space<vmem>>, vector<8x7xf32>,
    %cst_59 = arith.constant 5.000000e-01 : f32
    %125 = vector.broadcast %cst_59 : f32 to vector<8x68xf32>
    %126 = arith.mulf %125, %121 : vector<8x68xf32>
    %127 = arith.mulf %121, %121 : vector<8x68xf32>
    %128 = arith.mulf %127, %121 : vector<8x68xf32>
    %cst_60 = arith.constant 4.471500e-02 : f32
    %129 = vector.broadcast %cst_60 : f32 to vector<8x68xf32>
    %130 = arith.mulf %129, %128 : vector<8x68xf32>
    %131 = arith.addf %121, %130 : vector<8x68xf32>
    %cst_61 = arith.constant 0.797884583 : f32
    %132 = vector.broadcast %cst_61 : f32 to vector<8x68xf32>
    %133 = arith.mulf %132, %131 : vector<8x68xf32>
    %134 = math.tanh %133 : vector<8x68xf32>
    %cst_62 = arith.constant 1.000000e+00 : f32
    %135 = vector.broadcast %cst_62 : f32 to vector<8x68xf32>
    %136 = arith.addf %135, %134 : vector<8x68xf32>
    %137 = arith.mulf %126, %136 : vector<8x68xf32>
    %c0_63 = arith.constant 0 : index
    %c0_64 = arith.constant 0 : index
    %138 = vector.load %arg9[%c0_63, %c0_64] : memref<68x128xf32, #tpu.memory_space<vmem>>, vector<68x128xf32>
    %cst_65 = arith.constant dense<0.000000e+00> : vector<8x128xf32>
    %139 = tpu.matmul %137, %138, %cst_65 {dimension_numbers = #tpu.dot_dimension_numbers<[1], [0], [0], [1], [0, 0, 1, 1], [], []>} : vector<8x68xf32>, vector<68x128xf32>, vector<8x128xf32> -> vector<8x128xf32>
    %c0_66 = arith.constant 0 : index
    %c0_67 = arith.constant 0 : index
    %140 = vector.load %arg10[%c0_66, %c0_67] : memref<1x128xf32, #tpu.memory_space<vmem>>, vector<1x128xf32>
    %141 = vector.broadcast %140 : vector<1x128xf32> to vector<8x128xf32>
    %142 = arith.addf %139, %141 : vector<8x128xf32>
    %c0_68 = arith.constant 0 : index
    %c0_69 = arith.constant 0 : index
    %143 = vector.load %arg11[%c0_68, %c0_69] : memref<8x128xf32, #tpu.memory_space<vmem>>, vector<8x128xf32>
    tpu.vector_store %arg11[%c0_68, %c0_69], %142 {strides = array<i32>} : memref<8x128xf32, #tpu.memory_space<vmem>>, vector<8x128xf32>,
    return
  }
  func.func @transform_0(%arg0: i32) -> (i32, i32, i32) {
    %c0_i32 = arith.constant 0 : i32
    %c0_i32_0 = arith.constant 0 : i32
    %c0_i32_1 = arith.constant 0 : i32
    return %c0_i32, %arg0, %c0_i32_0 : i32, i32, i32
  }
  func.func @transform_1(%arg0: i32) -> (i32, i32) {
    %c0_i32 = arith.constant 0 : i32
    %c0_i32_0 = arith.constant 0 : i32
    %c0_i32_1 = arith.constant 0 : i32
    return %c0_i32, %c0_i32_0 : i32, i32
  }
  func.func @transform_2(%arg0: i32) -> (i32, i32) {
    %c0_i32 = arith.constant 0 : i32
    %c0_i32_0 = arith.constant 0 : i32
    %c0_i32_1 = arith.constant 0 : i32
    return %c0_i32, %c0_i32_0 : i32, i32
  }
  func.func @transform_3(%arg0: i32) -> (i32, i32) {
    %c0_i32 = arith.constant 0 : i32
    %c0_i32_0 = arith.constant 0 : i32
    %c0_i32_1 = arith.constant 0 : i32
    return %c0_i32, %c0_i32_0 : i32, i32
  }
  func.func @transform_4(%arg0: i32) -> (i32, i32) {
    %c0_i32 = arith.constant 0 : i32
    %c0_i32_0 = arith.constant 0 : i32
    %c0_i32_1 = arith.constant 0 : i32
    return %c0_i32, %c0_i32_0 : i32, i32
  }
  func.func @transform_5(%arg0: i32) -> (i32, i32) {
    %c0_i32 = arith.constant 0 : i32
    %c0_i32_0 = arith.constant 0 : i32
    %c0_i32_1 = arith.constant 0 : i32
    return %c0_i32, %c0_i32_0 : i32, i32
  }
  func.func @transform_6(%arg0: i32) -> (i32, i32, i32) {
    %c0_i32 = arith.constant 0 : i32
    %c0_i32_0 = arith.constant 0 : i32
    %c0_i32_1 = arith.constant 0 : i32
    %c0_i32_2 = arith.constant 0 : i32
    return %c0_i32, %c0_i32_0, %c0_i32_1 : i32, i32, i32
  }
  func.func @transform_7(%arg0: i32) -> (i32, i32) {
    %c0_i32 = arith.constant 0 : i32
    %c0_i32_0 = arith.constant 0 : i32
    %c0_i32_1 = arith.constant 0 : i32
    return %c0_i32, %c0_i32_0 : i32, i32
  }
  func.func @transform_8(%arg0: i32) -> (i32, i32) {
    %c0_i32 = arith.constant 0 : i32
    %c0_i32_0 = arith.constant 0 : i32
    %c0_i32_1 = arith.constant 0 : i32
    return %c0_i32, %c0_i32_0 : i32, i32
  }
  func.func @transform_9(%arg0: i32) -> (i32, i32) {
    %c0_i32 = arith.constant 0 : i32
    %c0_i32_0 = arith.constant 0 : i32
    %c0_i32_1 = arith.constant 0 : i32
    return %c0_i32, %c0_i32_0 : i32, i32
  }
  func.func @transform_10(%arg0: i32) -> (i32, i32) {
    %c0_i32 = arith.constant 0 : i32
    %c0_i32_0 = arith.constant 0 : i32
    return %arg0, %c0_i32 : i32, i32
  }
  func.func @transform_11(%arg0: i32) -> (i32, i32) {
    %c0_i32 = arith.constant 0 : i32
    %c0_i32_0 = arith.constant 0 : i32
    return %arg0, %c0_i32 : i32, i32
  }
}

</mosaic_0001>

<llo_original>
// kernel: local_autoencoder_forward.1
$region0: #{local_autoencoder_forward.1}
  #allocation0 [shape = 'u32[]', space=smem, size = 0x4, offset = 0x4, fixed_abs, tag = 'smem constant byte address 0x4 - core index']
  #allocation1 [shape = 'u32[144,128]{1,0:T(1,128)}', space=vmem, size = 0x12000, scoped, tag = 'internal scratch']
  %s0 = inlined_call_operand.vmem [shape: f32[8,8,17], index: 0, kind: input, shape index: {}]
  %s1 = inlined_call_operand.vmem [shape: f32[16,16], index: 1, kind: input, shape index: {}]
  %s2 = inlined_call_operand.vmem [shape: f32[32,16], index: 2, kind: input, shape index: {}]
  %s3 = inlined_call_operand.vmem [shape: f32[1,16], index: 3, kind: input, shape index: {}]
  %s4 = inlined_call_operand.vmem [shape: f32[16,8], index: 4, kind: input, shape index: {}]
  %s5 = inlined_call_operand.vmem [shape: f32[1,8], index: 5, kind: input, shape index: {}]
  %s6 = inlined_call_operand.vmem [shape: f32[8,7,68], index: 6, kind: input, shape index: {}]
  %s7 = inlined_call_operand.vmem [shape: f32[1,68], index: 7, kind: input, shape index: {}]
  %s8 = inlined_call_operand.vmem [shape: f32[68,128], index: 8, kind: input, shape index: {}]
  %s9 = inlined_call_operand.vmem [shape: f32[1,128], index: 9, kind: input, shape index: {}]
  %s10 = inlined_call_operand.vmem [shape: f32[8,128], index: 10, kind: output, shape index: {0}]
  %s11 = inlined_call_operand.vmem [shape: f32[8,56], index: 11, kind: output, shape index: {1}]
  %12 = xla_tuple %s10, %s11
  %s13 = sld [smem:[#allocation0]]
  $region58: #{local_autoencoder_forward.1} parent=0
    _
  %s15 = ssub.s32 1, %s13
  %s16 = scalar_select 0, %s15, %s13
  // Predicated region
  $region2: #{local_autoencoder_forward.1} parent=0 // pred_check
    _
  $region3: #{local_autoencoder_forward.1} parent=0 // pred_check_branch
    %18 = sbr.rel (0) target = $region5
  $region4: #{local_autoencoder_forward.1} parent=0 // pred_region
    _
  $region5: #{local_autoencoder_forward.1} parent=0 // pred_fallthru
    _
  // Predicated region
  $region6: #{local_autoencoder_forward.1} parent=0 // pred_check
    _
  $region7: #{local_autoencoder_forward.1} parent=0 // pred_check_branch
    %20 = sbr.rel (0) target = $region9
  $region8: #{local_autoencoder_forward.1} parent=0 // pred_region
    _
  $region9: #{local_autoencoder_forward.1} parent=0 // pred_fallthru
    _
  // Predicated region
  $region10: #{local_autoencoder_forward.1} parent=0 // pred_check
    _
  $region11: #{local_autoencoder_forward.1} parent=0 // pred_check_branch
    %22 = sbr.rel (0) target = $region13
  $region12: #{local_autoencoder_forward.1} parent=0 // pred_region
    _
  $region13: #{local_autoencoder_forward.1} parent=0 // pred_fallthru
    _
  // Predicated region
  $region14: #{local_autoencoder_forward.1} parent=0 // pred_check
    _
  $region15: #{local_autoencoder_forward.1} parent=0 // pred_check_branch
    %24 = sbr.rel (0) target = $region17
  $region16: #{local_autoencoder_forward.1} parent=0 // pred_region
    _
  $region17: #{local_autoencoder_forward.1} parent=0 // pred_fallthru
    _
  // Predicated region
  $region18: #{local_autoencoder_forward.1} parent=0 // pred_check
    _
  $region19: #{local_autoencoder_forward.1} parent=0 // pred_check_branch
    %26 = sbr.rel (0) target = $region21
  $region20: #{local_autoencoder_forward.1} parent=0 // pred_region
    _
  $region21: #{local_autoencoder_forward.1} parent=0 // pred_fallthru
    _
  // Predicated region
  $region22: #{local_autoencoder_forward.1} parent=0 // pred_check
    _
  $region23: #{local_autoencoder_forward.1} parent=0 // pred_check_branch
    %28 = sbr.rel (0) target = $region25
  $region24: #{local_autoencoder_forward.1} parent=0 // pred_region
    _
  $region25: #{local_autoencoder_forward.1} parent=0 // pred_fallthru
    _
  // Predicated region
  $region26: #{local_autoencoder_forward.1} parent=0 // pred_check
    _
  $region27: #{local_autoencoder_forward.1} parent=0 // pred_check_branch
    %30 = sbr.rel (0) target = $region29
  $region28: #{local_autoencoder_forward.1} parent=0 // pred_region
    _
  $region29: #{local_autoencoder_forward.1} parent=0 // pred_fallthru
    _
  // Predicated region
  $region30: #{local_autoencoder_forward.1} parent=0 // pred_check
    _
  $region31: #{local_autoencoder_forward.1} parent=0 // pred_check_branch
    %32 = sbr.rel (0) target = $region33
  $region32: #{local_autoencoder_forward.1} parent=0 // pred_region
    _
  $region33: #{local_autoencoder_forward.1} parent=0 // pred_fallthru
    _
  // Predicated region
  $region34: #{local_autoencoder_forward.1} parent=0 // pred_check
    _
  $region35: #{local_autoencoder_forward.1} parent=0 // pred_check_branch
    %34 = sbr.rel (0) target = $region37
  $region36: #{local_autoencoder_forward.1} parent=0 // pred_region
    _
  $region37: #{local_autoencoder_forward.1} parent=0 // pred_fallthru
    _
  // Predicated region
  $region38: #{local_autoencoder_forward.1} parent=0 // pred_check
    _
  $region39: #{local_autoencoder_forward.1} parent=0 // pred_check_branch
    %36 = sbr.rel (0) target = $region41
  $region40: #{local_autoencoder_forward.1} parent=0 // pred_region
    _
  $region41: #{local_autoencoder_forward.1} parent=0 // pred_fallthru
    _
  %v37 = vld [vmem:[%s0] sm:$0xff]
  %v38 = vld [vmem:[%s0 + $0x8] sm:$0xff]
  %v39 = vld [vmem:[%s0 + $0x10] sm:$0xff]
  %v40 = vld [vmem:[%s0 + $0x18] sm:$0xff]
  %v41 = vld [vmem:[%s0 + $0x20] sm:$0xff]
  %v42 = vld [vmem:[%s0 + $0x28] sm:$0xff]
  %v43 = vld [vmem:[%s0 + $0x30] sm:$0xff]
  %v44 = vld [vmem:[%s0 + $0x38] sm:$0xff]
  %v45 = vcvt.f32.s32.to.zero.pseudo %v37
  %v46 = vcvt.f32.s32.to.zero.pseudo %v38
  %v47 = vcvt.f32.s32.to.zero.pseudo %v39
  %v48 = vcvt.f32.s32.to.zero.pseudo %v40
  %v49 = vcvt.f32.s32.to.zero.pseudo %v41
  %v50 = vcvt.f32.s32.to.zero.pseudo %v42
  %v51 = vcvt.f32.s32.to.zero.pseudo %v43
  %v52 = vcvt.f32.s32.to.zero.pseudo %v44
  %v53 = vlaneseq
  %v54 = vand.u32 %v53, 127
  %55 = vset.pattern.permute.xlu0 16
  %56 = vperm.xlu0 %55, %v45
  %v57 = vpop.permute.xlu0 %56
  %58 = vset.pattern.permute.xlu0 16
  %59 = vperm.xlu0 %58, %v46
  %v60 = vpop.permute.xlu0 %59
  %61 = vset.pattern.permute.xlu0 16
  %62 = vperm.xlu0 %61, %v47
  %v63 = vpop.permute.xlu0 %62
  %64 = vset.pattern.permute.xlu0 16
  %65 = vperm.xlu0 %64, %v48
  %v66 = vpop.permute.xlu0 %65
  %67 = vset.pattern.permute.xlu0 16
  %68 = vperm.xlu0 %67, %v49
  %v69 = vpop.permute.xlu0 %68
  %70 = vset.pattern.permute.xlu0 16
  %71 = vperm.xlu0 %70, %v50
  %v72 = vpop.permute.xlu0 %71
  %73 = vset.pattern.permute.xlu0 16
  %74 = vperm.xlu0 %73, %v51
  %v75 = vpop.permute.xlu0 %74
  %76 = vset.pattern.permute.xlu0 16
  %77 = vperm.xlu0 %76, %v52
  %v78 = vpop.permute.xlu0 %77
  %vm79 = vcmp.eq.s32.totalorder %v54, %v57
  %vm80 = vcmp.eq.s32.totalorder %v54, %v60
  %vm81 = vcmp.eq.s32.totalorder %v54, %v63
  %vm82 = vcmp.eq.s32.totalorder %v54, %v66
  %vm83 = vcmp.eq.s32.totalorder %v54, %v69
  %vm84 = vcmp.eq.s32.totalorder %v54, %v72
  %vm85 = vcmp.eq.s32.totalorder %v54, %v75
  %vm86 = vcmp.eq.s32.totalorder %v54, %v78
  %v87 = vsel %vm79, 1, 0
  %v88 = vsel %vm80, 1, 0
  %v89 = vsel %vm81, 1, 0
  %v90 = vsel %vm82, 1, 0
  %v91 = vsel %vm83, 1, 0
  %v92 = vsel %vm84, 1, 0
  %v93 = vsel %vm85, 1, 0
  %v94 = vsel %vm86, 1, 0
  %v95 = vcvt.s32.f32 %v87
  %v96 = vcvt.s32.f32 %v88
  %v97 = vcvt.s32.f32 %v89
  %v98 = vcvt.s32.f32 %v90
  %v99 = vcvt.s32.f32 %v91
  %v100 = vcvt.s32.f32 %v92
  %v101 = vcvt.s32.f32 %v93
  %v102 = vcvt.s32.f32 %v94
  %v103 = vld [vmem:[%s1] sm:$0xff]
  %v104 = vld [vmem:[%s1 + $0x8] sm:$0xff]
  %v105 = vld [vmem:[%s2] sm:$0xff]
  %v106 = vld [vmem:[%s2 + $0x8] sm:$0xff]
  %v107 = vld [vmem:[%s2 + $0x10] sm:$0xff]
  %v108 = vld [vmem:[%s2 + $0x18] sm:$0xff]
  %vm109 = vcmask 261120
  %v111 = vsel %vm109, %v95, 0
  %v114 = vsel %vm109, %v96, 0
  %v117 = vsel %vm109, %v97, 0
  %v120 = vsel %vm109, %v98, 0
  %v123 = vsel %vm109, %v99, 0
  %v126 = vsel %vm109, %v100, 0
  %v129 = vsel %vm109, %v101, 0
  %v132 = vsel %vm109, %v102, 0
  %134 = vmatprep.subr.mxu0 0.0
  %135 = vmatpush1.msra.mxu0 0.0
  %136 = vmatprep.subr.mxu0 0.0
  %137 = vmatpush1.msra.mxu0 0.0
  %138 = vmatprep.subr.mxu0 0.0
  %139 = vmatpush1.msra.mxu0 0.0
  %140 = vmatprep.subr.mxu0 0.0
  %141 = vmatpush1.msra.mxu0 0.0
  %142 = vmatprep.subr.mxu0 0.0
  %143 = vmatpush1.msra.mxu0 0.0
  %144 = vmatprep.subr.mxu0 0.0
  %145 = vmatpush1.msra.mxu0 0.0
  %146 = vmatprep.subr.mxu0 0.0
  %147 = vmatpush1.msra.mxu0 0.0
  %148 = vmatprep.subr.mxu0 0.0
  %149 = vmatpush1.msra.mxu0 0.0
  %150 = vmatprep.subr.mxu0 0.0
  %151 = vmatpush1.msra.mxu0 0.0
  %152 = vmatprep.subr.mxu0 0.0
  %153 = vmatpush1.msra.mxu0 0.0
  %154 = vmatprep.subr.mxu0 0.0
  %155 = vmatpush1.msra.mxu0 0.0
  %156 = vmatprep.subr.mxu0 0.0
  %157 = vmatpush1.msra.mxu0 0.0
  %158 = vmatprep.subr.mxu0 0.0
  %159 = vmatpush1.msra.mxu0 %v108
  %160 = vmatprep.subr.mxu0 0.0
  %161 = vmatpush1.msra.mxu0 %v107
  %162 = vmatprep.subr.mxu0 0.0
  %163 = vmatpush1.msra.mxu0 %v106
  %164 = vmatprep.subr.mxu0 0.0
  %165 = vmatpush1.msra.mxu0 %v105
  %166 = vmatprep.subr.mxu0 0.0
  %167 = vmatpush2.msra.mxu0 0.0
  %168 = vmatprep.subr.mxu0 0.0
  %169 = vmatpush2.msra.mxu0 0.0
  %170 = vmatprep.subr.mxu0 0.0
  %171 = vmatpush2.msra.mxu0 0.0
  %172 = vmatprep.subr.mxu0 0.0
  %173 = vmatpush2.msra.mxu0 0.0
  %174 = vmatprep.subr.mxu0 0.0
  %175 = vmatpush2.msra.mxu0 0.0
  %176 = vmatprep.subr.mxu0 0.0
  %177 = vmatpush2.msra.mxu0 0.0
  %178 = vmatprep.subr.mxu0 0.0
  %179 = vmatpush2.msra.mxu0 0.0
  %180 = vmatprep.subr.mxu0 0.0
  %181 = vmatpush2.msra.mxu0 0.0
  %182 = vmatprep.subr.mxu0 0.0
  %183 = vmatpush2.msra.mxu0 0.0
  %184 = vmatprep.subr.mxu0 0.0
  %185 = vmatpush2.msra.mxu0 0.0
  %186 = vmatprep.subr.mxu0 0.0
  %187 = vmatpush2.msra.mxu0 0.0
  %188 = vmatprep.subr.mxu0 0.0
  %189 = vmatpush2.msra.mxu0 0.0
  %190 = vmatprep.subr.mxu0 0.0
  %191 = vmatpush2.msra.mxu0 0.0
  %192 = vmatprep.subr.mxu0 0.0
  %193 = vmatpush2.msra.mxu0 0.0
  %194 = vmatprep.subr.mxu0 0.0
  %195 = vmatpush2.msra.mxu0 0.0
  %196 = vmatprep.subr.mxu0 0.0
  %197 = vmatpush2.msra.mxu0 0.0
  %198 = vmatprep.mubr.f32.mxu0 0.0
  %199 = vmatmul.mubr.f32.gmra.mxu0 %v111
  %v200 = vpop.f32.mrf.mxu0
  %v201 = vadd.f32 0.0, %v200
  %v202 = vpop.f32.mrf.mxu0
  %203 = vmatprep.mubr.f32.mxu0 0.0
  %204 = vmatmul.mubr.f32.gmra.mxu0 %v114
  %v205 = vpop.f32.mrf.mxu0
  %v206 = vadd.f32 0.0, %v205
  %v207 = vpop.f32.mrf.mxu0
  %208 = vmatprep.mubr.f32.mxu0 0.0
  %209 = vmatmul.mubr.f32.gmra.mxu0 %v117
  %v210 = vpop.f32.mrf.mxu0
  %v211 = vadd.f32 0.0, %v210
  %v212 = vpop.f32.mrf.mxu0
  %213 = vmatprep.mubr.f32.mxu0 0.0
  %214 = vmatmul.mubr.f32.gmra.mxu0 %v120
  %v215 = vpop.f32.mrf.mxu0
  %v216 = vadd.f32 0.0, %v215
  %v217 = vpop.f32.mrf.mxu0
  %218 = vmatprep.mubr.f32.mxu0 0.0
  %219 = vmatmul.mubr.f32.gmra.mxu0 %v123
  %v220 = vpop.f32.mrf.mxu0
  %v221 = vadd.f32 0.0, %v220
  %v222 = vpop.f32.mrf.mxu0
  %223 = vmatprep.mubr.f32.mxu0 0.0
  %224 = vmatmul.mubr.f32.gmra.mxu0 %v126
  %v225 = vpop.f32.mrf.mxu0
  %v226 = vadd.f32 0.0, %v225
  %v227 = vpop.f32.mrf.mxu0
  %228 = vmatprep.mubr.f32.mxu0 0.0
  %229 = vmatmul.mubr.f32.gmra.mxu0 %v129
  %v230 = vpop.f32.mrf.mxu0
  %v231 = vadd.f32 0.0, %v230
  %v232 = vpop.f32.mrf.mxu0
  %233 = vmatprep.mubr.f32.mxu0 0.0
  %234 = vmatmul.mubr.f32.gmra.mxu0 %v132
  %v235 = vpop.f32.mrf.mxu0
  %v236 = vadd.f32 0.0, %v235
  %v237 = vpop.f32.mrf.mxu0
  %238 = vdwg.mxu0
  %vm239 = vcmask 130048
  %v241 = vsel %vm239, %v37, 0
  %v244 = vsel %vm239, %v38, 0
  %v247 = vsel %vm239, %v39, 0
  %v250 = vsel %vm239, %v40, 0
  %v253 = vsel %vm239, %v41, 0
  %v256 = vsel %vm239, %v42, 0
  %v259 = vsel %vm239, %v43, 0
  %v262 = vsel %vm239, %v44, 0
  %264 = vmatprep.subr.mxu0 0.0
  %265 = vmatpush1.msra.mxu0 0.0
  %266 = vmatprep.subr.mxu0 0.0
  %267 = vmatpush1.msra.mxu0 0.0
  %268 = vmatprep.subr.mxu0 0.0
  %269 = vmatpush1.msra.mxu0 0.0
  %270 = vmatprep.subr.mxu0 0.0
  %271 = vmatpush1.msra.mxu0 0.0
  %272 = vmatprep.subr.mxu0 0.0
  %273 = vmatpush1.msra.mxu0 0.0
  %274 = vmatprep.subr.mxu0 0.0
  %275 = vmatpush1.msra.mxu0 0.0
  %276 = vmatprep.subr.mxu0 0.0
  %277 = vmatpush1.msra.mxu0 0.0
  %278 = vmatprep.subr.mxu0 0.0
  %279 = vmatpush1.msra.mxu0 0.0
  %280 = vmatprep.subr.mxu0 0.0
  %281 = vmatpush1.msra.mxu0 0.0
  %282 = vmatprep.subr.mxu0 0.0
  %283 = vmatpush1.msra.mxu0 0.0
  %284 = vmatprep.subr.mxu0 0.0
  %285 = vmatpush1.msra.mxu0 0.0
  %286 = vmatprep.subr.mxu0 0.0
  %287 = vmatpush1.msra.mxu0 0.0
  %288 = vmatprep.subr.mxu0 0.0
  %289 = vmatpush1.msra.mxu0 0.0
  %290 = vmatprep.subr.mxu0 0.0
  %291 = vmatpush1.msra.mxu0 0.0
  %292 = vmatprep.subr.mxu0 0.0
  %293 = vmatpush1.msra.mxu0 %v104
  %294 = vmatprep.subr.mxu0 0.0
  %295 = vmatpush1.msra.mxu0 %v103
  %296 = vmatprep.subr.mxu0 0.0
  %297 = vmatpush2.msra.mxu0 0.0
  %298 = vmatprep.subr.mxu0 0.0
  %299 = vmatpush2.msra.mxu0 0.0
  %300 = vmatprep.subr.mxu0 0.0
  %301 = vmatpush2.msra.mxu0 0.0
  %302 = vmatprep.subr.mxu0 0.0
  %303 = vmatpush2.msra.mxu0 0.0
  %304 = vmatprep.subr.mxu0 0.0
  %305 = vmatpush2.msra.mxu0 0.0
  %306 = vmatprep.subr.mxu0 0.0
  %307 = vmatpush2.msra.mxu0 0.0
  %308 = vmatprep.subr.mxu0 0.0
  %309 = vmatpush2.msra.mxu0 0.0
  %310 = vmatprep.subr.mxu0 0.0
  %311 = vmatpush2.msra.mxu0 0.0
  %312 = vmatprep.subr.mxu0 0.0
  %313 = vmatpush2.msra.mxu0 0.0
  %314 = vmatprep.subr.mxu0 0.0
  %315 = vmatpush2.msra.mxu0 0.0
  %316 = vmatprep.subr.mxu0 0.0
  %317 = vmatpush2.msra.mxu0 0.0
  %318 = vmatprep.subr.mxu0 0.0
  %319 = vmatpush2.msra.mxu0 0.0
  %320 = vmatprep.subr.mxu0 0.0
  %321 = vmatpush2.msra.mxu0 0.0
  %322 = vmatprep.subr.mxu0 0.0
  %323 = vmatpush2.msra.mxu0 0.0
  %324 = vmatprep.subr.mxu0 0.0
  %325 = vmatpush2.msra.mxu0 0.0
  %326 = vmatprep.subr.mxu0 0.0
  %327 = vmatpush2.msra.mxu0 0.0
  %328 = vmatprep.mubr.f32.mxu0 0.0
  %329 = vmatmul.mubr.f32.gmra.mxu0 %v241
  %v330 = vpop.f32.mrf.mxu0
  %v331 = vadd.f32 %v201, %v330
  %v332 = vpop.f32.mrf.mxu0
  %333 = vmatprep.mubr.f32.mxu0 0.0
  %334 = vmatmul.mubr.f32.gmra.mxu0 %v244
  %v335 = vpop.f32.mrf.mxu0
  %v336 = vadd.f32 %v206, %v335
  %v337 = vpop.f32.mrf.mxu0
  %338 = vmatprep.mubr.f32.mxu0 0.0
  %339 = vmatmul.mubr.f32.gmra.mxu0 %v247
  %v340 = vpop.f32.mrf.mxu0
  %v341 = vadd.f32 %v211, %v340
  %v342 = vpop.f32.mrf.mxu0
  %343 = vmatprep.mubr.f32.mxu0 0.0
  %344 = vmatmul.mubr.f32.gmra.mxu0 %v250
  %v345 = vpop.f32.mrf.mxu0
  %v346 = vadd.f32 %v216, %v345
  %v347 = vpop.f32.mrf.mxu0
  %348 = vmatprep.mubr.f32.mxu0 0.0
  %349 = vmatmul.mubr.f32.gmra.mxu0 %v253
  %v350 = vpop.f32.mrf.mxu0
  %v351 = vadd.f32 %v221, %v350
  %v352 = vpop.f32.mrf.mxu0
  %353 = vmatprep.mubr.f32.mxu0 0.0
  %354 = vmatmul.mubr.f32.gmra.mxu0 %v256
  %v355 = vpop.f32.mrf.mxu0
  %v356 = vadd.f32 %v226, %v355
  %v357 = vpop.f32.mrf.mxu0
  %358 = vmatprep.mubr.f32.mxu0 0.0
  %359 = vmatmul.mubr.f32.gmra.mxu0 %v259
  %v360 = vpop.f32.mrf.mxu0
  %v361 = vadd.f32 %v231, %v360
  %v362 = vpop.f32.mrf.mxu0
  %363 = vmatprep.mubr.f32.mxu0 0.0
  %364 = vmatmul.mubr.f32.gmra.mxu0 %v262
  %v365 = vpop.f32.mrf.mxu0
  %v366 = vadd.f32 %v236, %v365
  %v367 = vpop.f32.mrf.mxu0
  %368 = vdwg.mxu0
  %v369 = vld [vmem:[%s3] sm:$0x1]
  %v371 = vlaneseq
  %v372 = vshrl.u32 %v371, 7
  %v373 = vsub.s32 0, %v372
  %v374 = vrot.slane %v369, %v373
  %v376 = vadd.f32 %v331, %v374
  %v377 = vadd.f32 %v336, %v374
  %v378 = vadd.f32 %v341, %v374
  %v379 = vadd.f32 %v346, %v374
  %v380 = vadd.f32 %v351, %v374
  %v381 = vadd.f32 %v356, %v374
  %v382 = vadd.f32 %v361, %v374
  %v383 = vadd.f32 %v366, %v374
  %v384 = vmul.f32 %v376, 0.5
  %v385 = vmul.f32 %v377, 0.5
  %v386 = vmul.f32 %v378, 0.5
  %v387 = vmul.f32 %v379, 0.5
  %v388 = vmul.f32 %v380, 0.5
  %v389 = vmul.f32 %v381, 0.5
  %v390 = vmul.f32 %v382, 0.5
  %v391 = vmul.f32 %v383, 0.5
  %v392 = vmul.f32 %v376, %v376
  %v393 = vmul.f32 %v377, %v377
  %v394 = vmul.f32 %v378, %v378
  %v395 = vmul.f32 %v379, %v379
  %v396 = vmul.f32 %v380, %v380
  %v397 = vmul.f32 %v381, %v381
  %v398 = vmul.f32 %v382, %v382
  %v399 = vmul.f32 %v383, %v383
  %v400 = vmul.f32 %v392, %v376
  %v401 = vmul.f32 %v393, %v377
  %v402 = vmul.f32 %v394, %v378
  %v403 = vmul.f32 %v395, %v379
  %v404 = vmul.f32 %v396, %v380
  %v405 = vmul.f32 %v397, %v381
  %v406 = vmul.f32 %v398, %v382
  %v407 = vmul.f32 %v399, %v383
  %v408 = vmul.f32 %v400, 0.044715
  %v409 = vmul.f32 %v401, 0.044715
  %v410 = vmul.f32 %v402, 0.044715
  %v411 = vmul.f32 %v403, 0.044715
  %v412 = vmul.f32 %v404, 0.044715
  %v413 = vmul.f32 %v405, 0.044715
  %v414 = vmul.f32 %v406, 0.044715
  %v415 = vmul.f32 %v407, 0.044715
  %v416 = vadd.f32 %v376, %v408
  %v417 = vadd.f32 %v377, %v409
  %v418 = vadd.f32 %v378, %v410
  %v419 = vadd.f32 %v379, %v411
  %v420 = vadd.f32 %v380, %v412
  %v421 = vadd.f32 %v381, %v413
  %v422 = vadd.f32 %v382, %v414
  %v423 = vadd.f32 %v383, %v415
  %v424 = vmul.f32 %v416, 0.7978846
  %v425 = vmul.f32 %v417, 0.7978846
  %v426 = vmul.f32 %v418, 0.7978846
  %v427 = vmul.f32 %v419, 0.7978846
  %v428 = vmul.f32 %v420, 0.7978846
  %v429 = vmul.f32 %v421, 0.7978846
  %v430 = vmul.f32 %v422, 0.7978846
  %v431 = vmul.f32 %v423, 0.7978846
  %v432 = vtanh.pop %v424
  %v433 = vtanh.pop %v425
  %v434 = vtanh.pop %v426
  %v435 = vtanh.pop %v427
  %v436 = vtanh.pop %v428
  %v437 = vtanh.pop %v429
  %v438 = vtanh.pop %v430
  %v439 = vtanh.pop %v431
  %v440 = vadd.f32 %v432, 1.0
  %v441 = vadd.f32 %v433, 1.0
  %v442 = vadd.f32 %v434, 1.0
  %v443 = vadd.f32 %v435, 1.0
  %v444 = vadd.f32 %v436, 1.0
  %v445 = vadd.f32 %v437, 1.0
  %v446 = vadd.f32 %v438, 1.0
  %v447 = vadd.f32 %v439, 1.0
  %v448 = vmul.f32 %v384, %v440
  %v449 = vmul.f32 %v385, %v441
  %v450 = vmul.f32 %v386, %v442
  %v451 = vmul.f32 %v387, %v443
  %v452 = vmul.f32 %v388, %v444
  %v453 = vmul.f32 %v389, %v445
  %v454 = vmul.f32 %v390, %v446
  %v455 = vmul.f32 %v391, %v447
  %v456 = vld [vmem:[%s4] sm:$0xff]
  %v457 = vld [vmem:[%s4 + $0x8] sm:$0xff]
  %v458 = vld [vmem:[%s5] sm:$0x1]
  %v460 = vlaneseq
  %v461 = vshrl.u32 %v460, 7
  %v462 = vsub.s32 0, %v461
  %v463 = vrot.slane %v458, %v462
  %v466 = vsel %vm239, %v448, 0
  %v469 = vsel %vm239, %v449, 0
  %v472 = vsel %vm239, %v450, 0
  %v475 = vsel %vm239, %v451, 0
  %v478 = vsel %vm239, %v452, 0
  %v481 = vsel %vm239, %v453, 0
  %v484 = vsel %vm239, %v454, 0
  %v487 = vsel %vm239, %v455, 0
  %489 = vmatprep.subr.mxu0 0.0
  %490 = vmatpush1.msra.mxu0 0.0
  %491 = vmatprep.subr.mxu0 0.0
  %492 = vmatpush1.msra.mxu0 0.0
  %493 = vmatprep.subr.mxu0 0.0
  %494 = vmatpush1.msra.mxu0 0.0
  %495 = vmatprep.subr.mxu0 0.0
  %496 = vmatpush1.msra.mxu0 0.0
  %497 = vmatprep.subr.mxu0 0.0
  %498 = vmatpush1.msra.mxu0 0.0
  %499 = vmatprep.subr.mxu0 0.0
  %500 = vmatpush1.msra.mxu0 0.0
  %501 = vmatprep.subr.mxu0 0.0
  %502 = vmatpush1.msra.mxu0 0.0
  %503 = vmatprep.subr.mxu0 0.0
  %504 = vmatpush1.msra.mxu0 0.0
  %505 = vmatprep.subr.mxu0 0.0
  %506 = vmatpush1.msra.mxu0 0.0
  %507 = vmatprep.subr.mxu0 0.0
  %508 = vmatpush1.msra.mxu0 0.0
  %509 = vmatprep.subr.mxu0 0.0
  %510 = vmatpush1.msra.mxu0 0.0
  %511 = vmatprep.subr.mxu0 0.0
  %512 = vmatpush1.msra.mxu0 0.0
  %513 = vmatprep.subr.mxu0 0.0
  %514 = vmatpush1.msra.mxu0 0.0
  %515 = vmatprep.subr.mxu0 0.0
  %516 = vmatpush1.msra.mxu0 0.0
  %517 = vmatprep.subr.mxu0 0.0
  %518 = vmatpush1.msra.mxu0 %v457
  %519 = vmatprep.subr.mxu0 0.0
  %520 = vmatpush1.msra.mxu0 %v456
  %521 = vmatprep.subr.mxu0 0.0
  %522 = vmatpush2.msra.mxu0 0.0
  %523 = vmatprep.subr.mxu0 0.0
  %524 = vmatpush2.msra.mxu0 0.0
  %525 = vmatprep.subr.mxu0 0.0
  %526 = vmatpush2.msra.mxu0 0.0
  %527 = vmatprep.subr.mxu0 0.0
  %528 = vmatpush2.msra.mxu0 0.0
  %529 = vmatprep.subr.mxu0 0.0
  %530 = vmatpush2.msra.mxu0 0.0
  %531 = vmatprep.subr.mxu0 0.0
  %532 = vmatpush2.msra.mxu0 0.0
  %533 = vmatprep.subr.mxu0 0.0
  %534 = vmatpush2.msra.mxu0 0.0
  %535 = vmatprep.subr.mxu0 0.0
  %536 = vmatpush2.msra.mxu0 0.0
  %537 = vmatprep.subr.mxu0 0.0
  %538 = vmatpush2.msra.mxu0 0.0
  %539 = vmatprep.subr.mxu0 0.0
  %540 = vmatpush2.msra.mxu0 0.0
  %541 = vmatprep.subr.mxu0 0.0
  %542 = vmatpush2.msra.mxu0 0.0
  %543 = vmatprep.subr.mxu0 0.0
  %544 = vmatpush2.msra.mxu0 0.0
  %545 = vmatprep.subr.mxu0 0.0
  %546 = vmatpush2.msra.mxu0 0.0
  %547 = vmatprep.subr.mxu0 0.0
  %548 = vmatpush2.msra.mxu0 0.0
  %549 = vmatprep.subr.mxu0 0.0
  %550 = vmatpush2.msra.mxu0 0.0
  %551 = vmatprep.subr.mxu0 0.0
  %552 = vmatpush2.msra.mxu0 0.0
  %553 = vmatprep.mubr.f32.mxu0 0.0
  %554 = vmatmul.mubr.f32.gmra.mxu0 %v466
  %v555 = vpop.f32.mrf.mxu0
  %v556 = vadd.f32 %v463, %v555
  %v557 = vpop.f32.mrf.mxu0
  %558 = vmatprep.mubr.f32.mxu0 0.0
  %559 = vmatmul.mubr.f32.gmra.mxu0 %v469
  %v560 = vpop.f32.mrf.mxu0
  %v561 = vadd.f32 %v463, %v560
  %v562 = vpop.f32.mrf.mxu0
  %563 = vmatprep.mubr.f32.mxu0 0.0
  %564 = vmatmul.mubr.f32.gmra.mxu0 %v472
  %v565 = vpop.f32.mrf.mxu0
  %v566 = vadd.f32 %v463, %v565
  %v567 = vpop.f32.mrf.mxu0
  %568 = vmatprep.mubr.f32.mxu0 0.0
  %569 = vmatmul.mubr.f32.gmra.mxu0 %v475
  %v570 = vpop.f32.mrf.mxu0
  %v571 = vadd.f32 %v463, %v570
  %v572 = vpop.f32.mrf.mxu0
  %573 = vmatprep.mubr.f32.mxu0 0.0
  %574 = vmatmul.mubr.f32.gmra.mxu0 %v478
  %v575 = vpop.f32.mrf.mxu0
  %v576 = vadd.f32 %v463, %v575
  %v577 = vpop.f32.mrf.mxu0
  %578 = vmatprep.mubr.f32.mxu0 0.0
  %579 = vmatmul.mubr.f32.gmra.mxu0 %v481
  %v580 = vpop.f32.mrf.mxu0
  %v581 = vadd.f32 %v463, %v580
  %v582 = vpop.f32.mrf.mxu0
  %583 = vmatprep.mubr.f32.mxu0 0.0
  %584 = vmatmul.mubr.f32.gmra.mxu0 %v484
  %v585 = vpop.f32.mrf.mxu0
  %v586 = vadd.f32 %v463, %v585
  %v587 = vpop.f32.mrf.mxu0
  %588 = vmatprep.mubr.f32.mxu0 0.0
  %589 = vmatmul.mubr.f32.gmra.mxu0 %v487
  %v590 = vpop.f32.mrf.mxu0
  %v591 = vadd.f32 %v463, %v590
  %v592 = vpop.f32.mrf.mxu0
  %593 = vdwg.mxu0
  %v594 = vmul.f32 %v556, 0.5
  %v595 = vmul.f32 %v561, 0.5
  %v596 = vmul.f32 %v566, 0.5
  %v597 = vmul.f32 %v571, 0.5
  %v598 = vmul.f32 %v576, 0.5
  %v599 = vmul.f32 %v581, 0.5
  %v600 = vmul.f32 %v586, 0.5
  %v601 = vmul.f32 %v591, 0.5
  %v602 = vmul.f32 %v556, %v556
  %v603 = vmul.f32 %v561, %v561
  %v604 = vmul.f32 %v566, %v566
  %v605 = vmul.f32 %v571, %v571
  %v606 = vmul.f32 %v576, %v576
  %v607 = vmul.f32 %v581, %v581
  %v608 = vmul.f32 %v586, %v586
  %v609 = vmul.f32 %v591, %v591
  %v610 = vmul.f32 %v602, %v556
  %v611 = vmul.f32 %v603, %v561
  %v612 = vmul.f32 %v604, %v566
  %v613 = vmul.f32 %v605, %v571
  %v614 = vmul.f32 %v606, %v576
  %v615 = vmul.f32 %v607, %v581
  %v616 = vmul.f32 %v608, %v586
  %v617 = vmul.f32 %v609, %v591
  %v618 = vmul.f32 %v610, 0.044715
  %v619 = vmul.f32 %v611, 0.044715
  %v620 = vmul.f32 %v612, 0.044715
  %v621 = vmul.f32 %v613, 0.044715
  %v622 = vmul.f32 %v614, 0.044715
  %v623 = vmul.f32 %v615, 0.044715
  %v624 = vmul.f32 %v616, 0.044715
  %v625 = vmul.f32 %v617, 0.044715
  %v626 = vadd.f32 %v556, %v618
  %v627 = vadd.f32 %v561, %v619
  %v628 = vadd.f32 %v566, %v620
  %v629 = vadd.f32 %v571, %v621
  %v630 = vadd.f32 %v576, %v622
  %v631 = vadd.f32 %v581, %v623
  %v632 = vadd.f32 %v586, %v624
  %v633 = vadd.f32 %v591, %v625
  %v634 = vmul.f32 %v626, 0.7978846
  %v635 = vmul.f32 %v627, 0.7978846
  %v636 = vmul.f32 %v628, 0.7978846
  %v637 = vmul.f32 %v629, 0.7978846
  %v638 = vmul.f32 %v630, 0.7978846
  %v639 = vmul.f32 %v631, 0.7978846
  %v640 = vmul.f32 %v632, 0.7978846
  %v641 = vmul.f32 %v633, 0.7978846
  %v642 = vtanh.pop %v634
  %v643 = vtanh.pop %v635
  %v644 = vtanh.pop %v636
  %v645 = vtanh.pop %v637
  %v646 = vtanh.pop %v638
  %v647 = vtanh.pop %v639
  %v648 = vtanh.pop %v640
  %v649 = vtanh.pop %v641
  %v650 = vadd.f32 %v642, 1.0
  %v651 = vadd.f32 %v643, 1.0
  %v652 = vadd.f32 %v644, 1.0
  %v653 = vadd.f32 %v645, 1.0
  %v654 = vadd.f32 %v646, 1.0
  %v655 = vadd.f32 %v647, 1.0
  %v656 = vadd.f32 %v648, 1.0
  %v657 = vadd.f32 %v649, 1.0
  %v658 = vmul.f32 %v594, %v650
  %v659 = vmul.f32 %v595, %v651
  %v660 = vmul.f32 %v596, %v652
  %v661 = vmul.f32 %v597, %v653
  %v662 = vmul.f32 %v598, %v654
  %v663 = vmul.f32 %v599, %v655
  %v664 = vmul.f32 %v600, %v656
  %v665 = vmul.f32 %v601, %v657
  %v666 = vld [vmem:[%s7] sm:$0x1]
  %v667 = vld [vmem:[%s6] sm:$0x7f]
  %vm668 = vcmask 56320
  %v670 = vsel %vm668, %v658, 0
  %vm672 = vcmask 1046528
  %v674 = vsel %vm672, %v667, 0
  %676 = vmatprep.subr.mxu0 0.0
  %677 = vmatpush1.msra.mxu0 0.0
  %678 = vmatprep.subr.mxu0 0.0
  %679 = vmatpush1.msra.mxu0 0.0
  %680 = vmatprep.subr.mxu0 0.0
  %681 = vmatpush1.msra.mxu0 0.0
  %682 = vmatprep.subr.mxu0 0.0
  %683 = vmatpush1.msra.mxu0 0.0
  %684 = vmatprep.subr.mxu0 0.0
  %685 = vmatpush1.msra.mxu0 0.0
  %686 = vmatprep.subr.mxu0 0.0
  %687 = vmatpush1.msra.mxu0 0.0
  %688 = vmatprep.subr.mxu0 0.0
  %689 = vmatpush1.msra.mxu0 0.0
  %690 = vmatprep.subr.mxu0 0.0
  %691 = vmatpush1.msra.mxu0 0.0
  %692 = vmatprep.subr.mxu0 0.0
  %693 = vmatpush1.msra.mxu0 0.0
  %694 = vmatprep.subr.mxu0 0.0
  %695 = vmatpush1.msra.mxu0 0.0
  %696 = vmatprep.subr.mxu0 0.0
  %697 = vmatpush1.msra.mxu0 0.0
  %698 = vmatprep.subr.mxu0 0.0
  %699 = vmatpush1.msra.mxu0 0.0
  %700 = vmatprep.subr.mxu0 0.0
  %701 = vmatpush1.msra.mxu0 0.0
  %702 = vmatprep.subr.mxu0 0.0
  %703 = vmatpush1.msra.mxu0 0.0
  %704 = vmatprep.subr.mxu0 0.0
  %705 = vmatpush1.msra.mxu0 0.0
  %706 = vmatprep.subr.mxu0 0.0
  %707 = vmatpush1.msra.mxu0 %v674
  %708 = vmatprep.subr.mxu0 0.0
  %709 = vmatpush2.msra.mxu0 0.0
  %710 = vmatprep.subr.mxu0 0.0
  %711 = vmatpush2.msra.mxu0 0.0
  %712 = vmatprep.subr.mxu0 0.0
  %713 = vmatpush2.msra.mxu0 0.0
  %714 = vmatprep.subr.mxu0 0.0
  %715 = vmatpush2.msra.mxu0 0.0
  %716 = vmatprep.subr.mxu0 0.0
  %717 = vmatpush2.msra.mxu0 0.0
  %718 = vmatprep.subr.mxu0 0.0
  %719 = vmatpush2.msra.mxu0 0.0
  %720 = vmatprep.subr.mxu0 0.0
  %721 = vmatpush2.msra.mxu0 0.0
  %722 = vmatprep.subr.mxu0 0.0
  %723 = vmatpush2.msra.mxu0 0.0
  %724 = vmatprep.subr.mxu0 0.0
  %725 = vmatpush2.msra.mxu0 0.0
  %726 = vmatprep.subr.mxu0 0.0
  %727 = vmatpush2.msra.mxu0 0.0
  %728 = vmatprep.subr.mxu0 0.0
  %729 = vmatpush2.msra.mxu0 0.0
  %730 = vmatprep.subr.mxu0 0.0
  %731 = vmatpush2.msra.mxu0 0.0
  %732 = vmatprep.subr.mxu0 0.0
  %733 = vmatpush2.msra.mxu0 0.0
  %734 = vmatprep.subr.mxu0 0.0
  %735 = vmatpush2.msra.mxu0 0.0
  %736 = vmatprep.subr.mxu0 0.0
  %737 = vmatpush2.msra.mxu0 0.0
  %738 = vmatprep.subr.mxu0 0.0
  %739 = vmatpush2.msra.mxu0 0.0
  %740 = vmatprep.mubr.f32.mxu0 0.0
  %741 = vmatmul.mubr.f32.gmra.mxu0 %v670
  %v742 = vpop.f32.mrf.mxu0
  %v743 = vadd.f32 0.0, %v742
  %v744 = vpop.f32.mrf.mxu0
  %745 = vdwg.mxu0
  %v747 = vlaneseq
  %v748 = vshrl.u32 %v747, 7
  %v749 = vsub.s32 0, %v748
  %v750 = vrot.slane %v666, %v749
  %v752 = vadd.f32 %v750, %v743
  %753 = vst.msk [vmem:[%s11] sm:$0xff] %vm668, %v658
  %s754 = scalar_lea.vmem %s6, 8
  %v755 = vld [vmem:[%s754] sm:$0x7f]
  %v757 = vsel %vm668, %v659, 0
  %v760 = vsel %vm672, %v755, 0
  %762 = vmatprep.subr.mxu0 0.0
  %763 = vmatpush1.msra.mxu0 0.0
  %764 = vmatprep.subr.mxu0 0.0
  %765 = vmatpush1.msra.mxu0 0.0
  %766 = vmatprep.subr.mxu0 0.0
  %767 = vmatpush1.msra.mxu0 0.0
  %768 = vmatprep.subr.mxu0 0.0
  %769 = vmatpush1.msra.mxu0 0.0
  %770 = vmatprep.subr.mxu0 0.0
  %771 = vmatpush1.msra.mxu0 0.0
  %772 = vmatprep.subr.mxu0 0.0
  %773 = vmatpush1.msra.mxu0 0.0
  %774 = vmatprep.subr.mxu0 0.0
  %775 = vmatpush1.msra.mxu0 0.0
  %776 = vmatprep.subr.mxu0 0.0
  %777 = vmatpush1.msra.mxu0 0.0
  %778 = vmatprep.subr.mxu0 0.0
  %779 = vmatpush1.msra.mxu0 0.0
  %780 = vmatprep.subr.mxu0 0.0
  %781 = vmatpush1.msra.mxu0 0.0
  %782 = vmatprep.subr.mxu0 0.0
  %783 = vmatpush1.msra.mxu0 0.0
  %784 = vmatprep.subr.mxu0 0.0
  %785 = vmatpush1.msra.mxu0 0.0
  %786 = vmatprep.subr.mxu0 0.0
  %787 = vmatpush1.msra.mxu0 0.0
  %788 = vmatprep.subr.mxu0 0.0
  %789 = vmatpush1.msra.mxu0 0.0
  %790 = vmatprep.subr.mxu0 0.0
  %791 = vmatpush1.msra.mxu0 0.0
  %792 = vmatprep.subr.mxu0 0.0
  %793 = vmatpush1.msra.mxu0 %v760
  %794 = vmatprep.subr.mxu0 0.0
  %795 = vmatpush2.msra.mxu0 0.0
  %796 = vmatprep.subr.mxu0 0.0
  %797 = vmatpush2.msra.mxu0 0.0
  %798 = vmatprep.subr.mxu0 0.0
  %799 = vmatpush2.msra.mxu0 0.0
  %800 = vmatprep.subr.mxu0 0.0
  %801 = vmatpush2.msra.mxu0 0.0
  %802 = vmatprep.subr.mxu0 0.0
  %803 = vmatpush2.msra.mxu0 0.0
  %804 = vmatprep.subr.mxu0 0.0
  %805 = vmatpush2.msra.mxu0 0.0
  %806 = vmatprep.subr.mxu0 0.0
  %807 = vmatpush2.msra.mxu0 0.0
  %808 = vmatprep.subr.mxu0 0.0
  %809 = vmatpush2.msra.mxu0 0.0
  %810 = vmatprep.subr.mxu0 0.0
  %811 = vmatpush2.msra.mxu0 0.0
  %812 = vmatprep.subr.mxu0 0.0
  %813 = vmatpush2.msra.mxu0 0.0
  %814 = vmatprep.subr.mxu0 0.0
  %815 = vmatpush2.msra.mxu0 0.0
  %816 = vmatprep.subr.mxu0 0.0
  %817 = vmatpush2.msra.mxu0 0.0
  %818 = vmatprep.subr.mxu0 0.0
  %819 = vmatpush2.msra.mxu0 0.0
  %820 = vmatprep.subr.mxu0 0.0
  %821 = vmatpush2.msra.mxu0 0.0
  %822 = vmatprep.subr.mxu0 0.0
  %823 = vmatpush2.msra.mxu0 0.0
  %824 = vmatprep.subr.mxu0 0.0
  %825 = vmatpush2.msra.mxu0 0.0
  %826 = vmatprep.mubr.f32.mxu0 0.0
  %827 = vmatmul.mubr.f32.gmra.mxu0 %v757
  %v828 = vpop.f32.mrf.mxu0
  %v829 = vadd.f32 0.0, %v828
  %v830 = vpop.f32.mrf.mxu0
  %831 = vdwg.mxu0
  %v832 = vadd.f32 %v752, %v829
  %833 = vrot.lane.b32.xlu0 %v659, 7
  %v834 = vpop.permute.xlu0 %833
  %vm836 = vcmask 113720
  %837 = vst.msk [vmem:[%s11] sm:$0xff] %vm836, %v834
  %s838 = scalar_lea.vmem %s6, 16
  %v839 = vld [vmem:[%s838] sm:$0x7f]
  %v841 = vsel %vm668, %v660, 0
  %v844 = vsel %vm672, %v839, 0
  %846 = vmatprep.subr.mxu0 0.0
  %847 = vmatpush1.msra.mxu0 0.0
  %848 = vmatprep.subr.mxu0 0.0
  %849 = vmatpush1.msra.mxu0 0.0
  %850 = vmatprep.subr.mxu0 0.0
  %851 = vmatpush1.msra.mxu0 0.0
  %852 = vmatprep.subr.mxu0 0.0
  %853 = vmatpush1.msra.mxu0 0.0
  %854 = vmatprep.subr.mxu0 0.0
  %855 = vmatpush1.msra.mxu0 0.0
  %856 = vmatprep.subr.mxu0 0.0
  %857 = vmatpush1.msra.mxu0 0.0
  %858 = vmatprep.subr.mxu0 0.0
  %859 = vmatpush1.msra.mxu0 0.0
  %860 = vmatprep.subr.mxu0 0.0
  %861 = vmatpush1.msra.mxu0 0.0
  %862 = vmatprep.subr.mxu0 0.0
  %863 = vmatpush1.msra.mxu0 0.0
  %864 = vmatprep.subr.mxu0 0.0
  %865 = vmatpush1.msra.mxu0 0.0
  %866 = vmatprep.subr.mxu0 0.0
  %867 = vmatpush1.msra.mxu0 0.0
  %868 = vmatprep.subr.mxu0 0.0
  %869 = vmatpush1.msra.mxu0 0.0
  %870 = vmatprep.subr.mxu0 0.0
  %871 = vmatpush1.msra.mxu0 0.0
  %872 = vmatprep.subr.mxu0 0.0
  %873 = vmatpush1.msra.mxu0 0.0
  %874 = vmatprep.subr.mxu0 0.0
  %875 = vmatpush1.msra.mxu0 0.0
  %876 = vmatprep.subr.mxu0 0.0
  %877 = vmatpush1.msra.mxu0 %v844
  %878 = vmatprep.subr.mxu0 0.0
  %879 = vmatpush2.msra.mxu0 0.0
  %880 = vmatprep.subr.mxu0 0.0
  %881 = vmatpush2.msra.mxu0 0.0
  %882 = vmatprep.subr.mxu0 0.0
  %883 = vmatpush2.msra.mxu0 0.0
  %884 = vmatprep.subr.mxu0 0.0
  %885 = vmatpush2.msra.mxu0 0.0
  %886 = vmatprep.subr.mxu0 0.0
  %887 = vmatpush2.msra.mxu0 0.0
  %888 = vmatprep.subr.mxu0 0.0
  %889 = vmatpush2.msra.mxu0 0.0
  %890 = vmatprep.subr.mxu0 0.0
  %891 = vmatpush2.msra.mxu0 0.0
  %892 = vmatprep.subr.mxu0 0.0
  %893 = vmatpush2.msra.mxu0 0.0
  %894 = vmatprep.subr.mxu0 0.0
  %895 = vmatpush2.msra.mxu0 0.0
  %896 = vmatprep.subr.mxu0 0.0
  %897 = vmatpush2.msra.mxu0 0.0
  %898 = vmatprep.subr.mxu0 0.0
  %899 = vmatpush2.msra.mxu0 0.0
  %900 = vmatprep.subr.mxu0 0.0
  %901 = vmatpush2.msra.mxu0 0.0
  %902 = vmatprep.subr.mxu0 0.0
  %903 = vmatpush2.msra.mxu0 0.0
  %904 = vmatprep.subr.mxu0 0.0
  %905 = vmatpush2.msra.mxu0 0.0
  %906 = vmatprep.subr.mxu0 0.0
  %907 = vmatpush2.msra.mxu0 0.0
  %908 = vmatprep.subr.mxu0 0.0
  %909 = vmatpush2.msra.mxu0 0.0
  %910 = vmatprep.mubr.f32.mxu0 0.0
  %911 = vmatmul.mubr.f32.gmra.mxu0 %v841
  %v912 = vpop.f32.mrf.mxu0
  %v913 = vadd.f32 0.0, %v912
  %v914 = vpop.f32.mrf.mxu0
  %915 = vdwg.mxu0
  %v916 = vadd.f32 %v832, %v913
  %917 = vrot.lane.b32.xlu0 %v660, 14
  %v918 = vpop.permute.xlu0 %917
  %vm920 = vcmask 171120
  %921 = vst.msk [vmem:[%s11] sm:$0xff] %vm920, %v918
  %s922 = scalar_lea.vmem %s6, 24
  %v923 = vld [vmem:[%s922] sm:$0x7f]
  %v925 = vsel %vm668, %v661, 0
  %v928 = vsel %vm672, %v923, 0
  %930 = vmatprep.subr.mxu0 0.0
  %931 = vmatpush1.msra.mxu0 0.0
  %932 = vmatprep.subr.mxu0 0.0
  %933 = vmatpush1.msra.mxu0 0.0
  %934 = vmatprep.subr.mxu0 0.0
  %935 = vmatpush1.msra.mxu0 0.0
  %936 = vmatprep.subr.mxu0 0.0
  %937 = vmatpush1.msra.mxu0 0.0
  %938 = vmatprep.subr.mxu0 0.0
  %939 = vmatpush1.msra.mxu0 0.0
  %940 = vmatprep.subr.mxu0 0.0
  %941 = vmatpush1.msra.mxu0 0.0
  %942 = vmatprep.subr.mxu0 0.0
  %943 = vmatpush1.msra.mxu0 0.0
  %944 = vmatprep.subr.mxu0 0.0
  %945 = vmatpush1.msra.mxu0 0.0
  %946 = vmatprep.subr.mxu0 0.0
  %947 = vmatpush1.msra.mxu0 0.0
  %948 = vmatprep.subr.mxu0 0.0
  %949 = vmatpush1.msra.mxu0 0.0
  %950 = vmatprep.subr.mxu0 0.0
  %951 = vmatpush1.msra.mxu0 0.0
  %952 = vmatprep.subr.mxu0 0.0
  %953 = vmatpush1.msra.mxu0 0.0
  %954 = vmatprep.subr.mxu0 0.0
  %955 = vmatpush1.msra.mxu0 0.0
  %956 = vmatprep.subr.mxu0 0.0
  %957 = vmatpush1.msra.mxu0 0.0
  %958 = vmatprep.subr.mxu0 0.0
  %959 = vmatpush1.msra.mxu0 0.0
  %960 = vmatprep.subr.mxu0 0.0
  %961 = vmatpush1.msra.mxu0 %v928
  %962 = vmatprep.subr.mxu0 0.0
  %963 = vmatpush2.msra.mxu0 0.0
  %964 = vmatprep.subr.mxu0 0.0
  %965 = vmatpush2.msra.mxu0 0.0
  %966 = vmatprep.subr.mxu0 0.0
  %967 = vmatpush2.msra.mxu0 0.0
  %968 = vmatprep.subr.mxu0 0.0
  %969 = vmatpush2.msra.mxu0 0.0
  %970 = vmatprep.subr.mxu0 0.0
  %971 = vmatpush2.msra.mxu0 0.0
  %972 = vmatprep.subr.mxu0 0.0
  %973 = vmatpush2.msra.mxu0 0.0
  %974 = vmatprep.subr.mxu0 0.0
  %975 = vmatpush2.msra.mxu0 0.0
  %976 = vmatprep.subr.mxu0 0.0
  %977 = vmatpush2.msra.mxu0 0.0
  %978 = vmatprep.subr.mxu0 0.0
  %979 = vmatpush2.msra.mxu0 0.0
  %980 = vmatprep.subr.mxu0 0.0
  %981 = vmatpush2.msra.mxu0 0.0
  %982 = vmatprep.subr.mxu0 0.0
  %983 = vmatpush2.msra.mxu0 0.0
  %984 = vmatprep.subr.mxu0 0.0
  %985 = vmatpush2.msra.mxu0 0.0
  %986 = vmatprep.subr.mxu0 0.0
  %987 = vmatpush2.msra.mxu0 0.0
  %988 = vmatprep.subr.mxu0 0.0
  %989 = vmatpush2.msra.mxu0 0.0
  %990 = vmatprep.subr.mxu0 0.0
  %991 = vmatpush2.msra.mxu0 0.0
  %992 = vmatprep.subr.mxu0 0.0
  %993 = vmatpush2.msra.mxu0 0.0
  %994 = vmatprep.mubr.f32.mxu0 0.0
  %995 = vmatmul.mubr.f32.gmra.mxu0 %v925
  %v996 = vpop.f32.mrf.mxu0
  %v997 = vadd.f32 0.0, %v996
  %v998 = vpop.f32.mrf.mxu0
  %999 = vdwg.mxu0
  %v1000 = vadd.f32 %v916, %v997
  %1001 = vrot.lane.b32.xlu0 %v661, 21
  %v1002 = vpop.permute.xlu0 %1001
  %vm1004 = vcmask 228520
  %1005 = vst.msk [vmem:[%s11] sm:$0xff] %vm1004, %v1002
  %s1006 = scalar_lea.vmem %s6, 32
  %v1007 = vld [vmem:[%s1006] sm:$0x7f]
  %v1009 = vsel %vm668, %v662, 0
  %v1012 = vsel %vm672, %v1007, 0
  %1014 = vmatprep.subr.mxu0 0.0
  %1015 = vmatpush1.msra.mxu0 0.0
  %1016 = vmatprep.subr.mxu0 0.0
  %1017 = vmatpush1.msra.mxu0 0.0
  %1018 = vmatprep.subr.mxu0 0.0
  %1019 = vmatpush1.msra.mxu0 0.0
  %1020 = vmatprep.subr.mxu0 0.0
  %1021 = vmatpush1.msra.mxu0 0.0
  %1022 = vmatprep.subr.mxu0 0.0
  %1023 = vmatpush1.msra.mxu0 0.0
  %1024 = vmatprep.subr.mxu0 0.0
  %1025 = vmatpush1.msra.mxu0 0.0
  %1026 = vmatprep.subr.mxu0 0.0
  %1027 = vmatpush1.msra.mxu0 0.0
  %1028 = vmatprep.subr.mxu0 0.0
  %1029 = vmatpush1.msra.mxu0 0.0
  %1030 = vmatprep.subr.mxu0 0.0
  %1031 = vmatpush1.msra.mxu0 0.0
  %1032 = vmatprep.subr.mxu0 0.0
  %1033 = vmatpush1.msra.mxu0 0.0
  %1034 = vmatprep.subr.mxu0 0.0
  %1035 = vmatpush1.msra.mxu0 0.0
  %1036 = vmatprep.subr.mxu0 0.0
  %1037 = vmatpush1.msra.mxu0 0.0
  %1038 = vmatprep.subr.mxu0 0.0
  %1039 = vmatpush1.msra.mxu0 0.0
  %1040 = vmatprep.subr.mxu0 0.0
  %1041 = vmatpush1.msra.mxu0 0.0
  %1042 = vmatprep.subr.mxu0 0.0
  %1043 = vmatpush1.msra.mxu0 0.0
  %1044 = vmatprep.subr.mxu0 0.0
  %1045 = vmatpush1.msra.mxu0 %v1012
  %1046 = vmatprep.subr.mxu0 0.0
  %1047 = vmatpush2.msra.mxu0 0.0
  %1048 = vmatprep.subr.mxu0 0.0
  %1049 = vmatpush2.msra.mxu0 0.0
  %1050 = vmatprep.subr.mxu0 0.0
  %1051 = vmatpush2.msra.mxu0 0.0
  %1052 = vmatprep.subr.mxu0 0.0
  %1053 = vmatpush2.msra.mxu0 0.0
  %1054 = vmatprep.subr.mxu0 0.0
  %1055 = vmatpush2.msra.mxu0 0.0
  %1056 = vmatprep.subr.mxu0 0.0
  %1057 = vmatpush2.msra.mxu0 0.0
  %1058 = vmatprep.subr.mxu0 0.0
  %1059 = vmatpush2.msra.mxu0 0.0
  %1060 = vmatprep.subr.mxu0 0.0
  %1061 = vmatpush2.msra.mxu0 0.0
  %1062 = vmatprep.subr.mxu0 0.0
  %1063 = vmatpush2.msra.mxu0 0.0
  %1064 = vmatprep.subr.mxu0 0.0
  %1065 = vmatpush2.msra.mxu0 0.0
  %1066 = vmatprep.subr.mxu0 0.0
  %1067 = vmatpush2.msra.mxu0 0.0
  %1068 = vmatprep.subr.mxu0 0.0
  %1069 = vmatpush2.msra.mxu0 0.0
  %1070 = vmatprep.subr.mxu0 0.0
  %1071 = vmatpush2.msra.mxu0 0.0
  %1072 = vmatprep.subr.mxu0 0.0
  %1073 = vmatpush2.msra.mxu0 0.0
  %1074 = vmatprep.subr.mxu0 0.0
  %1075 = vmatpush2.msra.mxu0 0.0
  %1076 = vmatprep.subr.mxu0 0.0
  %1077 = vmatpush2.msra.mxu0 0.0
  %1078 = vmatprep.mubr.f32.mxu0 0.0
  %1079 = vmatmul.mubr.f32.gmra.mxu0 %v1009
  %v1080 = vpop.f32.mrf.mxu0
  %v1081 = vadd.f32 0.0, %v1080
  %v1082 = vpop.f32.mrf.mxu0
  %1083 = vdwg.mxu0
  %v1084 = vadd.f32 %v1000, %v1081
  %1085 = vrot.lane.b32.xlu0 %v662, 28
  %v1086 = vpop.permute.xlu0 %1085
  %vm1088 = vcmask 285920
  %1089 = vst.msk [vmem:[%s11] sm:$0xff] %vm1088, %v1086
  %s1090 = scalar_lea.vmem %s6, 40
  %v1091 = vld [vmem:[%s1090] sm:$0x7f]
  %v1093 = vsel %vm668, %v663, 0
  %v1096 = vsel %vm672, %v1091, 0
  %1098 = vmatprep.subr.mxu0 0.0
  %1099 = vmatpush1.msra.mxu0 0.0
  %1100 = vmatprep.subr.mxu0 0.0
  %1101 = vmatpush1.msra.mxu0 0.0
  %1102 = vmatprep.subr.mxu0 0.0
  %1103 = vmatpush1.msra.mxu0 0.0
  %1104 = vmatprep.subr.mxu0 0.0
  %1105 = vmatpush1.msra.mxu0 0.0
  %1106 = vmatprep.subr.mxu0 0.0
  %1107 = vmatpush1.msra.mxu0 0.0
  %1108 = vmatprep.subr.mxu0 0.0
  %1109 = vmatpush1.msra.mxu0 0.0
  %1110 = vmatprep.subr.mxu0 0.0
  %1111 = vmatpush1.msra.mxu0 0.0
  %1112 = vmatprep.subr.mxu0 0.0
  %1113 = vmatpush1.msra.mxu0 0.0
  %1114 = vmatprep.subr.mxu0 0.0
  %1115 = vmatpush1.msra.mxu0 0.0
  %1116 = vmatprep.subr.mxu0 0.0
  %1117 = vmatpush1.msra.mxu0 0.0
  %1118 = vmatprep.subr.mxu0 0.0
  %1119 = vmatpush1.msra.mxu0 0.0
  %1120 = vmatprep.subr.mxu0 0.0
  %1121 = vmatpush1.msra.mxu0 0.0
  %1122 = vmatprep.subr.mxu0 0.0
  %1123 = vmatpush1.msra.mxu0 0.0
  %1124 = vmatprep.subr.mxu0 0.0
  %1125 = vmatpush1.msra.mxu0 0.0
  %1126 = vmatprep.subr.mxu0 0.0
  %1127 = vmatpush1.msra.mxu0 0.0
  %1128 = vmatprep.subr.mxu0 0.0
  %1129 = vmatpush1.msra.mxu0 %v1096
  %1130 = vmatprep.subr.mxu0 0.0
  %1131 = vmatpush2.msra.mxu0 0.0
  %1132 = vmatprep.subr.mxu0 0.0
  %1133 = vmatpush2.msra.mxu0 0.0
  %1134 = vmatprep.subr.mxu0 0.0
  %1135 = vmatpush2.msra.mxu0 0.0
  %1136 = vmatprep.subr.mxu0 0.0
  %1137 = vmatpush2.msra.mxu0 0.0
  %1138 = vmatprep.subr.mxu0 0.0
  %1139 = vmatpush2.msra.mxu0 0.0
  %1140 = vmatprep.subr.mxu0 0.0
  %1141 = vmatpush2.msra.mxu0 0.0
  %1142 = vmatprep.subr.mxu0 0.0
  %1143 = vmatpush2.msra.mxu0 0.0
  %1144 = vmatprep.subr.mxu0 0.0
  %1145 = vmatpush2.msra.mxu0 0.0
  %1146 = vmatprep.subr.mxu0 0.0
  %1147 = vmatpush2.msra.mxu0 0.0
  %1148 = vmatprep.subr.mxu0 0.0
  %1149 = vmatpush2.msra.mxu0 0.0
  %1150 = vmatprep.subr.mxu0 0.0
  %1151 = vmatpush2.msra.mxu0 0.0
  %1152 = vmatprep.subr.mxu0 0.0
  %1153 = vmatpush2.msra.mxu0 0.0
  %1154 = vmatprep.subr.mxu0 0.0
  %1155 = vmatpush2.msra.mxu0 0.0
  %1156 = vmatprep.subr.mxu0 0.0
  %1157 = vmatpush2.msra.mxu0 0.0
  %1158 = vmatprep.subr.mxu0 0.0
  %1159 = vmatpush2.msra.mxu0 0.0
  %1160 = vmatprep.subr.mxu0 0.0
  %1161 = vmatpush2.msra.mxu0 0.0
  %1162 = vmatprep.mubr.f32.mxu0 0.0
  %1163 = vmatmul.mubr.f32.gmra.mxu0 %v1093
  %v1164 = vpop.f32.mrf.mxu0
  %v1165 = vadd.f32 0.0, %v1164
  %v1166 = vpop.f32.mrf.mxu0
  %1167 = vdwg.mxu0
  %v1168 = vadd.f32 %v1084, %v1165
  %1169 = vrot.lane.b32.xlu0 %v663, 35
  %v1170 = vpop.permute.xlu0 %1169
  %vm1172 = vcmask 343320
  %1173 = vst.msk [vmem:[%s11] sm:$0xff] %vm1172, %v1170
  %s1174 = scalar_lea.vmem %s6, 48
  %v1175 = vld [vmem:[%s1174] sm:$0x7f]
  %v1177 = vsel %vm668, %v664, 0
  %v1180 = vsel %vm672, %v1175, 0
  %1182 = vmatprep.subr.mxu0 0.0
  %1183 = vmatpush1.msra.mxu0 0.0
  %1184 = vmatprep.subr.mxu0 0.0
  %1185 = vmatpush1.msra.mxu0 0.0
  %1186 = vmatprep.subr.mxu0 0.0
  %1187 = vmatpush1.msra.mxu0 0.0
  %1188 = vmatprep.subr.mxu0 0.0
  %1189 = vmatpush1.msra.mxu0 0.0
  %1190 = vmatprep.subr.mxu0 0.0
  %1191 = vmatpush1.msra.mxu0 0.0
  %1192 = vmatprep.subr.mxu0 0.0
  %1193 = vmatpush1.msra.mxu0 0.0
  %1194 = vmatprep.subr.mxu0 0.0
  %1195 = vmatpush1.msra.mxu0 0.0
  %1196 = vmatprep.subr.mxu0 0.0
  %1197 = vmatpush1.msra.mxu0 0.0
  %1198 = vmatprep.subr.mxu0 0.0
  %1199 = vmatpush1.msra.mxu0 0.0
  %1200 = vmatprep.subr.mxu0 0.0
  %1201 = vmatpush1.msra.mxu0 0.0
  %1202 = vmatprep.subr.mxu0 0.0
  %1203 = vmatpush1.msra.mxu0 0.0
  %1204 = vmatprep.subr.mxu0 0.0
  %1205 = vmatpush1.msra.mxu0 0.0
  %1206 = vmatprep.subr.mxu0 0.0
  %1207 = vmatpush1.msra.mxu0 0.0
  %1208 = vmatprep.subr.mxu0 0.0
  %1209 = vmatpush1.msra.mxu0 0.0
  %1210 = vmatprep.subr.mxu0 0.0
  %1211 = vmatpush1.msra.mxu0 0.0
  %1212 = vmatprep.subr.mxu0 0.0
  %1213 = vmatpush1.msra.mxu0 %v1180
  %1214 = vmatprep.subr.mxu0 0.0
  %1215 = vmatpush2.msra.mxu0 0.0
  %1216 = vmatprep.subr.mxu0 0.0
  %1217 = vmatpush2.msra.mxu0 0.0
  %1218 = vmatprep.subr.mxu0 0.0
  %1219 = vmatpush2.msra.mxu0 0.0
  %1220 = vmatprep.subr.mxu0 0.0
  %1221 = vmatpush2.msra.mxu0 0.0
  %1222 = vmatprep.subr.mxu0 0.0
  %1223 = vmatpush2.msra.mxu0 0.0
  %1224 = vmatprep.subr.mxu0 0.0
  %1225 = vmatpush2.msra.mxu0 0.0
  %1226 = vmatprep.subr.mxu0 0.0
  %1227 = vmatpush2.msra.mxu0 0.0
  %1228 = vmatprep.subr.mxu0 0.0
  %1229 = vmatpush2.msra.mxu0 0.0
  %1230 = vmatprep.subr.mxu0 0.0
  %1231 = vmatpush2.msra.mxu0 0.0
  %1232 = vmatprep.subr.mxu0 0.0
  %1233 = vmatpush2.msra.mxu0 0.0
  %1234 = vmatprep.subr.mxu0 0.0
  %1235 = vmatpush2.msra.mxu0 0.0
  %1236 = vmatprep.subr.mxu0 0.0
  %1237 = vmatpush2.msra.mxu0 0.0
  %1238 = vmatprep.subr.mxu0 0.0
  %1239 = vmatpush2.msra.mxu0 0.0
  %1240 = vmatprep.subr.mxu0 0.0
  %1241 = vmatpush2.msra.mxu0 0.0
  %1242 = vmatprep.subr.mxu0 0.0
  %1243 = vmatpush2.msra.mxu0 0.0
  %1244 = vmatprep.subr.mxu0 0.0
  %1245 = vmatpush2.msra.mxu0 0.0
  %1246 = vmatprep.mubr.f32.mxu0 0.0
  %1247 = vmatmul.mubr.f32.gmra.mxu0 %v1177
  %v1248 = vpop.f32.mrf.mxu0
  %v1249 = vadd.f32 0.0, %v1248
  %v1250 = vpop.f32.mrf.mxu0
  %1251 = vdwg.mxu0
  %v1252 = vadd.f32 %v1168, %v1249
  %1253 = vrot.lane.b32.xlu0 %v664, 42
  %v1254 = vpop.permute.xlu0 %1253
  %vm1256 = vcmask 400720
  %1257 = vst.msk [vmem:[%s11] sm:$0xff] %vm1256, %v1254
  %s1258 = scalar_lea.vmem %s6, 56
  %v1259 = vld [vmem:[%s1258] sm:$0x7f]
  %v1261 = vsel %vm668, %v665, 0
  %v1264 = vsel %vm672, %v1259, 0
  %1266 = vmatprep.subr.mxu0 0.0
  %1267 = vmatpush1.msra.mxu0 0.0
  %1268 = vmatprep.subr.mxu0 0.0
  %1269 = vmatpush1.msra.mxu0 0.0
  %1270 = vmatprep.subr.mxu0 0.0
  %1271 = vmatpush1.msra.mxu0 0.0
  %1272 = vmatprep.subr.mxu0 0.0
  %1273 = vmatpush1.msra.mxu0 0.0
  %1274 = vmatprep.subr.mxu0 0.0
  %1275 = vmatpush1.msra.mxu0 0.0
  %1276 = vmatprep.subr.mxu0 0.0
  %1277 = vmatpush1.msra.mxu0 0.0
  %1278 = vmatprep.subr.mxu0 0.0
  %1279 = vmatpush1.msra.mxu0 0.0
  %1280 = vmatprep.subr.mxu0 0.0
  %1281 = vmatpush1.msra.mxu0 0.0
  %1282 = vmatprep.subr.mxu0 0.0
  %1283 = vmatpush1.msra.mxu0 0.0
  %1284 = vmatprep.subr.mxu0 0.0
  %1285 = vmatpush1.msra.mxu0 0.0
  %1286 = vmatprep.subr.mxu0 0.0
  %1287 = vmatpush1.msra.mxu0 0.0
  %1288 = vmatprep.subr.mxu0 0.0
  %1289 = vmatpush1.msra.mxu0 0.0
  %1290 = vmatprep.subr.mxu0 0.0
  %1291 = vmatpush1.msra.mxu0 0.0
  %1292 = vmatprep.subr.mxu0 0.0
  %1293 = vmatpush1.msra.mxu0 0.0
  %1294 = vmatprep.subr.mxu0 0.0
  %1295 = vmatpush1.msra.mxu0 0.0
  %1296 = vmatprep.subr.mxu0 0.0
  %1297 = vmatpush1.msra.mxu0 %v1264
  %1298 = vmatprep.subr.mxu0 0.0
  %1299 = vmatpush2.msra.mxu0 0.0
  %1300 = vmatprep.subr.mxu0 0.0
  %1301 = vmatpush2.msra.mxu0 0.0
  %1302 = vmatprep.subr.mxu0 0.0
  %1303 = vmatpush2.msra.mxu0 0.0
  %1304 = vmatprep.subr.mxu0 0.0
  %1305 = vmatpush2.msra.mxu0 0.0
  %1306 = vmatprep.subr.mxu0 0.0
  %1307 = vmatpush2.msra.mxu0 0.0
  %1308 = vmatprep.subr.mxu0 0.0
  %1309 = vmatpush2.msra.mxu0 0.0
  %1310 = vmatprep.subr.mxu0 0.0
  %1311 = vmatpush2.msra.mxu0 0.0
  %1312 = vmatprep.subr.mxu0 0.0
  %1313 = vmatpush2.msra.mxu0 0.0
  %1314 = vmatprep.subr.mxu0 0.0
  %1315 = vmatpush2.msra.mxu0 0.0
  %1316 = vmatprep.subr.mxu0 0.0
  %1317 = vmatpush2.msra.mxu0 0.0
  %1318 = vmatprep.subr.mxu0 0.0
  %1319 = vmatpush2.msra.mxu0 0.0
  %1320 = vmatprep.subr.mxu0 0.0
  %1321 = vmatpush2.msra.mxu0 0.0
  %1322 = vmatprep.subr.mxu0 0.0
  %1323 = vmatpush2.msra.mxu0 0.0
  %1324 = vmatprep.subr.mxu0 0.0
  %1325 = vmatpush2.msra.mxu0 0.0
  %1326 = vmatprep.subr.mxu0 0.0
  %1327 = vmatpush2.msra.mxu0 0.0
  %1328 = vmatprep.subr.mxu0 0.0
  %1329 = vmatpush2.msra.mxu0 0.0
  %1330 = vmatprep.mubr.f32.mxu0 0.0
  %1331 = vmatmul.mubr.f32.gmra.mxu0 %v1261
  %v1332 = vpop.f32.mrf.mxu0
  %v1333 = vadd.f32 0.0, %v1332
  %v1334 = vpop.f32.mrf.mxu0
  %1335 = vdwg.mxu0
  %v1336 = vadd.f32 %v1252, %v1333
  %1337 = vrot.lane.b32.xlu0 %v665, 49
  %v1338 = vpop.permute.xlu0 %1337
  %vm1340 = vcmask 458120
  %1341 = vst.msk [vmem:[%s11] sm:$0xff] %vm1340, %v1338
  %v1342 = vmul.f32 %v1336, 0.5
  %v1343 = vmul.f32 %v1336, %v1336
  %v1344 = vmul.f32 %v1343, %v1336
  %v1345 = vmul.f32 %v1344, 0.044715
  %v1346 = vadd.f32 %v1336, %v1345
  %v1347 = vmul.f32 %v1346, 0.7978846
  %v1348 = vtanh.pop %v1347
  %v1349 = vadd.f32 %v1348, 1.0
  %v1350 = vmul.f32 %v1342, %v1349
  %v1351 = vld [vmem:[%s8] sm:$0xff]
  %v1352 = vld [vmem:[%s8 + $0x8] sm:$0xff]
  %v1353 = vld [vmem:[%s8 + $0x10] sm:$0xff]
  %v1354 = vld [vmem:[%s8 + $0x18] sm:$0xff]
  %v1355 = vld [vmem:[%s8 + $0x20] sm:$0xff]
  %v1356 = vld [vmem:[%s8 + $0x28] sm:$0xff]
  %v1357 = vld [vmem:[%s8 + $0x30] sm:$0xff]
  %v1358 = vld [vmem:[%s8 + $0x38] sm:$0xff]
  %v1359 = vld [vmem:[%s8 + $0x40] sm:$0xf]
  %v1360 = vld [vmem:[%s9] sm:$0x1]
  %v1362 = vlaneseq
  %v1363 = vshrl.u32 %v1362, 7
  %v1364 = vsub.s32 0, %v1363
  %v1365 = vrot.slane %v1360, %v1364
  %vm1367 = vcmask 556032
  %v1369 = vsel %vm1367, %v1350, 0
  %vm1371 = vcmask 1043456
  %v1373 = vsel %vm1371, %v1359, 0
  %1375 = vmatprep.subr.mxu0 0.0
  %1376 = vmatpush1.msra.mxu0 0.0
  %1377 = vmatprep.subr.mxu0 0.0
  %1378 = vmatpush1.msra.mxu0 0.0
  %1379 = vmatprep.subr.mxu0 0.0
  %1380 = vmatpush1.msra.mxu0 0.0
  %1381 = vmatprep.subr.mxu0 0.0
  %1382 = vmatpush1.msra.mxu0 0.0
  %1383 = vmatprep.subr.mxu0 0.0
  %1384 = vmatpush1.msra.mxu0 0.0
  %1385 = vmatprep.subr.mxu0 0.0
  %1386 = vmatpush1.msra.mxu0 0.0
  %1387 = vmatprep.subr.mxu0 0.0
  %1388 = vmatpush1.msra.mxu0 0.0
  %1389 = vmatprep.subr.mxu0 0.0
  %1390 = vmatpush1.msra.mxu0 %v1373
  %1391 = vmatprep.subr.mxu0 0.0
  %1392 = vmatpush1.msra.mxu0 %v1358
  %1393 = vmatprep.subr.mxu0 0.0
  %1394 = vmatpush1.msra.mxu0 %v1357
  %1395 = vmatprep.subr.mxu0 0.0
  %1396 = vmatpush1.msra.mxu0 %v1356
  %1397 = vmatprep.subr.mxu0 0.0
  %1398 = vmatpush1.msra.mxu0 %v1355
  %1399 = vmatprep.subr.mxu0 0.0
  %1400 = vmatpush1.msra.mxu0 %v1354
  %1401 = vmatprep.subr.mxu0 0.0
  %1402 = vmatpush1.msra.mxu0 %v1353
  %1403 = vmatprep.subr.mxu0 0.0
  %1404 = vmatpush1.msra.mxu0 %v1352
  %1405 = vmatprep.subr.mxu0 0.0
  %1406 = vmatpush1.msra.mxu0 %v1351
  %1407 = vmatprep.subr.mxu0 0.0
  %1408 = vmatpush2.msra.mxu0 0.0
  %1409 = vmatprep.subr.mxu0 0.0
  %1410 = vmatpush2.msra.mxu0 0.0
  %1411 = vmatprep.subr.mxu0 0.0
  %1412 = vmatpush2.msra.mxu0 0.0
  %1413 = vmatprep.subr.mxu0 0.0
  %1414 = vmatpush2.msra.mxu0 0.0
  %1415 = vmatprep.subr.mxu0 0.0
  %1416 = vmatpush2.msra.mxu0 0.0
  %1417 = vmatprep.subr.mxu0 0.0
  %1418 = vmatpush2.msra.mxu0 0.0
  %1419 = vmatprep.subr.mxu0 0.0
  %1420 = vmatpush2.msra.mxu0 0.0
  %1421 = vmatprep.subr.mxu0 0.0
  %1422 = vmatpush2.msra.mxu0 0.0
  %1423 = vmatprep.subr.mxu0 0.0
  %1424 = vmatpush2.msra.mxu0 0.0
  %1425 = vmatprep.subr.mxu0 0.0
  %1426 = vmatpush2.msra.mxu0 0.0
  %1427 = vmatprep.subr.mxu0 0.0
  %1428 = vmatpush2.msra.mxu0 0.0
  %1429 = vmatprep.subr.mxu0 0.0
  %1430 = vmatpush2.msra.mxu0 0.0
  %1431 = vmatprep.subr.mxu0 0.0
  %1432 = vmatpush2.msra.mxu0 0.0
  %1433 = vmatprep.subr.mxu0 0.0
  %1434 = vmatpush2.msra.mxu0 0.0
  %1435 = vmatprep.subr.mxu0 0.0
  %1436 = vmatpush2.msra.mxu0 0.0
  %1437 = vmatprep.subr.mxu0 0.0
  %1438 = vmatpush2.msra.mxu0 0.0
  %1439 = vmatprep.mubr.f32.mxu0 0.0
  %1440 = vmatmul.mubr.f32.gmra.mxu0 %v1369
  %v1441 = vpop.f32.mrf.mxu0
  %v1442 = vadd.f32 %v1365, %v1441
  %v1443 = vpop.f32.mrf.mxu0
  %1444 = vdwg.mxu0
  %1445 = vst [vmem:[%s10] sm:$0xff] %v1442
  // Predicated region
  $region42: #{local_autoencoder_forward.1} parent=0 // pred_check
    _
  $region43: #{local_autoencoder_forward.1} parent=0 // pred_check_branch
    %1447 = sbr.rel (0) target = $region45
  $region44: #{local_autoencoder_forward.1} parent=0 // pred_region
    _
  $region45: #{local_autoencoder_forward.1} parent=0 // pred_fallthru
    _
  // Predicated region
  $region46: #{local_autoencoder_forward.1} parent=0 // pred_check
    _
  $region47: #{local_autoencoder_forward.1} parent=0 // pred_check_branch
    %1449 = sbr.rel (0) target = $region49
  $region48: #{local_autoencoder_forward.1} parent=0 // pred_region
    _
  $region49: #{local_autoencoder_forward.1} parent=0 // pred_fallthru
    _
  // Predicated region
  $region50: #{local_autoencoder_forward.1} parent=0 // pred_check
    _
  $region51: #{local_autoencoder_forward.1} parent=0 // pred_check_branch
    %1451 = sbr.rel (0) target = $region53
  $region52: #{local_autoencoder_forward.1} parent=0 // pred_region
    _
  $region53: #{local_autoencoder_forward.1} parent=0 // pred_fallthru
    _
  // Predicated region
  $region54: #{local_autoencoder_forward.1} parent=0 // pred_check
    _
  $region55: #{local_autoencoder_forward.1} parent=0 // pred_check_branch
    %1453 = sbr.rel (0) target = $region57
  $region56: #{local_autoencoder_forward.1} parent=0 // pred_region
    _
  $region57: #{local_autoencoder_forward.1} parent=0 // pred_fallthru
    _

</llo_original>
